<compile_context>
chip_gen: v6e
topology: v6e:2x2x1
jax: 0.10.0
libtpu: 0.0.40
codegen_flags: <defaults>
</compile_context>

<pallas_src>
import functools

import numpy as np

import jax
import jax.numpy as jnp
from jax import lax
from jax.experimental import pallas as pl
from jax.experimental.pallas import tpu as pltpu


def _tap_shifts(W):
    """Static flat-index shifts for the 9 taps of a 3x3 conv (padding=1)."""
    return tuple((dy - 1) * W + (dx - 1) for dy in range(3) for dx in range(3))


def _border_masks_np(B, H, W):
    """(8, B*H*W) f32 masks (non-centre taps, row-major tap order) that zero
    out positions whose 3x3 neighbour falls outside the (padded) image."""
    M = B * H * W
    pos = np.arange(M, dtype=np.int64)
    hw = pos % (H * W)
    hh = hw // W
    ww = hw % W
    rows = []
    for dy in range(3):
        for dx in range(3):
            oy, ox = dy - 1, dx - 1
            if oy == 0 and ox == 0:
                continue                       # centre tap: no mask needed
            valid = np.ones(M, dtype=bool)
            if oy == -1:
                valid &= hh >= 1
            elif oy == 1:
                valid &= hh < H - 1
            if ox == -1:
                valid &= ww >= 1
            elif ox == 1:
                valid &= ww < W - 1
            rows.append(valid.astype(np.float32))
    return np.stack(rows, axis=0)              # (8, M)


def _spatial_attention_kernel(
    x_ref,      # (Cin, M)       channels-major, flattened B*H*W on lanes
    masks_ref,  # (8, M)         precomputed border masks (non-centre taps)
    w1t_ref,    # (C1, 9*Cin)
    b1_ref,     # (C1, 1)
    w2t_ref,    # (C2, 9*C1)
    b2_ref,     # (C2, 1)
    w3_ref,     # (C2, 1)        1x1 conv weights
    scal_ref,   # (1, 3) SMEM:   [prelu_alpha1, prelu_alpha2, bias3]
    out_ref,    # (1, M)
    *,
    shifts,
):
    M = out_ref.shape[-1]
    masks = masks_ref[...]                     # (8, M), loaded once

    def im2col(feat):
        """feat: (C, M) -> (9*C, M): the 9 zero-padded shifted copies stacked
        along the contraction (sublane) axis.  Shifts run on the XLU."""
        parts = []
        mrow = 0
        for t, s in enumerate(shifts):
            if t == 4:                         # centre tap: no shift, no mask
                parts.append(feat)
            else:
                shifted = pltpu.roll(feat, (-s) % M, 1)
                parts.append(shifted * masks[mrow:mrow + 1, :])
                mrow += 1
        return jnp.concatenate(parts, axis=0)

    # ---- stage 1: 3x3 conv (pad=1) as one fused matmul + bias + PReLU -------
    cols1 = im2col(x_ref[...])                                     # (9*Cin, M)
    z1 = jnp.dot(w1t_ref[...], cols1, preferred_element_type=jnp.float32)
    z1 = z1 + b1_ref[...]                                          # (C1, M)
    a1 = scal_ref[0, 0]
    h1 = jnp.where(z1 >= 0, z1, a1 * z1)

    # ---- stage 2: 3x3 conv (pad=1) as one fused matmul + bias + PReLU -------
    cols2 = im2col(h1)                                             # (9*C1, M)
    z2 = jnp.dot(w2t_ref[...], cols2, preferred_element_type=jnp.float32)
    z2 = z2 + b2_ref[...]                                          # (C2, M)
    a2 = scal_ref[0, 1]
    h2 = jnp.where(z2 >= 0, z2, a2 * z2)

    # ---- stage 3: 1x1 conv -> 1 channel on the VPU, + bias + sigmoid --------
    logits = jnp.sum(h2 * w3_ref[...], axis=0, keepdims=True) + scal_ref[0, 2]
    out_ref[...] = jax.nn.sigmoid(logits)                          # (1, M)


def spatial_attention(x_nchw, params):
    """x_nchw: (B, Cin, H, W) float32. Returns (B, 1, H, W) float32."""
    w1, b1, a1, w2, b2, a2, w3, b3 = params
    B, Cin, H, W = x_nchw.shape
    C1 = w1.shape[-1]
    C2 = w2.shape[-1]
    M = B * H * W

    # Layout plumbing in plain JAX: channels-major, flat batch*spatial on lanes.
    x_flat = jnp.transpose(x_nchw, (1, 0, 2, 3)).reshape(Cin, M)
    w1t = jnp.transpose(w1.reshape(9 * Cin, C1))        # (C1, 9*Cin)
    w2t = jnp.transpose(w2.reshape(9 * C1, C2))         # (C2, 9*C1)
    b1c = b1.reshape(C1, 1)
    b2c = b2.reshape(C2, 1)
    w3c = w3.reshape(C2, 1)
    scalars = jnp.stack([a1[0, 0], a2[0, 0], b3[0, 0]]).reshape(1, 3)
    masks = jnp.asarray(_border_masks_np(B, H, W))      # (8, M), host constant

    kernel = functools.partial(_spatial_attention_kernel, shifts=_tap_shifts(W))
    full2d = lambda shape: pl.BlockSpec(shape, lambda i: (0, 0))

    out_flat = pl.pallas_call(
        kernel,
        out_shape=jax.ShapeDtypeStruct((1, M), jnp.float32),
        grid_spec=pltpu.PrefetchScalarGridSpec(
            num_scalar_prefetch=0,
            grid=(1,),
            in_specs=[
                full2d((Cin, M)),
                full2d((8, M)),
                full2d((C1, 9 * Cin)),
                full2d((C1, 1)),
                full2d((C2, 9 * C1)),
                full2d((C2, 1)),
                full2d((C2, 1)),
                pl.BlockSpec(memory_space=pltpu.MemorySpace.SMEM),
            ],
            out_specs=pl.BlockSpec((1, M), lambda i: (0, 0)),
        ),
        compiler_params=pltpu.CompilerParams(
            dimension_semantics=("arbitrary",)),
    )(x_flat, masks, w1t, b1c, w2t, b2c, w3c, scalars)

    # (1, B*H*W) lane-dense slab -> (B, 1, H, W)
    return out_flat.reshape(B, 1, H, W)


def _reference(x_nchw, params):
    """Pure-JAX reference (mirrors the PyTorch module) for verification."""
    w1, b1, a1, w2, b2, a2, w3, b3 = params

    def conv(x, w, b, pad):
        y = lax.conv_general_dilated(
            x, w, window_strides=(1, 1), padding=[(pad, pad), (pad, pad)],
            dimension_numbers=("NCHW", "HWIO", "NCHW"))
        return y + b.reshape(1, -1, 1, 1)

    def prelu(x, a):
        return jnp.maximum(x, 0.0) + a * jnp.minimum(x, 0.0)

    h = prelu(conv(x_nchw, w1, b1[0], 1), a1[0, 0])
    h = prelu(conv(h, w2, b2[0], 1), a2[0, 0])
    h = conv(h, w3.reshape(1, 1, w3.shape[0], 1), b3[0], 0)
    return jax.nn.sigmoid(h)


def init_params(key, in_channels, reduction=4):
    c1 = in_channels // reduction
    c2 = c1 // reduction
    ks = jax.random.split(key, 6)
    # weights in (kh, kw, Cin, Cout) layout
    w1 = jax.random.normal(ks[0], (3, 3, in_channels, c1), jnp.float32) * 0.1
    b1 = jax.random.normal(ks[1], (1, c1), jnp.float32) * 0.1
    a1 = jnp.full((1, 1), 0.25, jnp.float32)          # PReLU default init
    w2 = jax.random.normal(ks[2], (3, 3, c1, c2), jnp.float32) * 0.1
    b2 = jax.random.normal(ks[3], (1, c2), jnp.float32) * 0.1
    a2 = jnp.full((1, 1), 0.25, jnp.float32)
    w3 = jax.random.normal(ks[4], (c2, 1), jnp.float32) * 0.1
    b3 = jax.random.normal(ks[5], (1, 1), jnp.float32) * 0.1
    return (w1, b1, a1, w2, b2, a2, w3, b3)


if __name__ == "__main__":
    key = jax.random.PRNGKey(0)
    k_x, k_p = jax.random.split(key)

    B, Cin, H, W = 2, 32, 16, 16   # in_channels=32 -> stage1=8, stage2=2
    x = jax.random.normal(k_x, (B, Cin, H, W), jnp.float32)
    params = init_params(k_p, Cin, reduction=4)

    out = spatial_attention(x, params)
    out = jax.block_until_ready(out)

    ref = jax.block_until_ready(_reference(x, params))
    assert out.shape == (B, 1, H, W), out.shape
    assert jnp.allclose(out, ref, rtol=1e-4, atol=1e-5), float(
        jnp.max(jnp.abs(out - ref)))

    print("KERNEL_OK")
</pallas_src>

<mosaic_0001>
module attributes {stable_mosaic.version = 11 : i64} {
  func.func @_spatial_attention_kernel(%arg0: i32, %arg1: memref<32x512xf32, #tpu.memory_space<vmem>>, %arg2: memref<8x512xf32, #tpu.memory_space<vmem>>, %arg3: memref<8x288xf32, #tpu.memory_space<vmem>>, %arg4: memref<8x1xf32, #tpu.memory_space<vmem>>, %arg5: memref<2x72xf32, #tpu.memory_space<vmem>>, %arg6: memref<2x1xf32, #tpu.memory_space<vmem>>, %arg7: memref<2x1xf32, #tpu.memory_space<vmem>>, %arg8: memref<1x3xf32, #tpu.memory_space<smem>>, %arg9: memref<1x512xf32, #tpu.memory_space<vmem>>) attributes {dimension_semantics = [#tpu.dimension_semantics<arbitrary>], iteration_bounds = array<i64: 1>, scalar_prefetch = 0 : i64, scratch_operands = 0 : i64, tpu.core_type = #tpu.core_type<tc>, window_params = [{pipeline_mode = #tpu.pipeline_mode<synchronous>, transform_indices = @transform_0, window_bounds = array<i64: 32, 512>}, {pipeline_mode = #tpu.pipeline_mode<synchronous>, transform_indices = @transform_1, window_bounds = array<i64: 8, 512>}, {pipeline_mode = #tpu.pipeline_mode<synchronous>, transform_indices = @transform_2, window_bounds = array<i64: 8, 288>}, {pipeline_mode = #tpu.pipeline_mode<synchronous>, transform_indices = @transform_3, window_bounds = array<i64: 8, 1>}, {pipeline_mode = #tpu.pipeline_mode<synchronous>, transform_indices = @transform_4, window_bounds = array<i64: 2, 72>}, {pipeline_mode = #tpu.pipeline_mode<synchronous>, transform_indices = @transform_5, window_bounds = array<i64: 2, 1>}, {pipeline_mode = #tpu.pipeline_mode<synchronous>, transform_indices = @transform_6, window_bounds = array<i64: 2, 1>}, {transform_indices = @transform_7, window_bounds = array<i64: 1, 3>}, {pipeline_mode = #tpu.pipeline_mode<synchronous>, transform_indices = @transform_8, window_bounds = array<i64: 1, 512>}]} {
    %c0 = arith.constant 0 : index
    %c0_0 = arith.constant 0 : index
    %0 = vector.load %arg2[%c0, %c0_0] : memref<8x512xf32, #tpu.memory_space<vmem>>, vector<8x512xf32>
    %c0_1 = arith.constant 0 : index
    %c0_2 = arith.constant 0 : index
    %1 = vector.load %arg1[%c0_1, %c0_2] : memref<32x512xf32, #tpu.memory_space<vmem>>, vector<32x512xf32>
    %c17_i32 = arith.constant 17 : i32
    %2 = tpu.dynamic_rotate %1 by %c17_i32 dim 1 : vector<32x512xf32>, i32 -> vector<32x512xf32>
    %3 = vector.extract_strided_slice %0 {offsets = [0, 0], sizes = [1, 512], strides = [1, 1]} : vector<8x512xf32> to vector<1x512xf32>
    %4 = vector.broadcast %3 : vector<1x512xf32> to vector<32x512xf32>
    %5 = arith.mulf %2, %4 : vector<32x512xf32>
    %c16_i32 = arith.constant 16 : i32
    %6 = tpu.dynamic_rotate %1 by %c16_i32 dim 1 : vector<32x512xf32>, i32 -> vector<32x512xf32>
    %7 = vector.extract_strided_slice %0 {offsets = [1, 0], sizes = [1, 512], strides = [1, 1]} : vector<8x512xf32> to vector<1x512xf32>
    %8 = vector.broadcast %7 : vector<1x512xf32> to vector<32x512xf32>
    %9 = arith.mulf %6, %8 : vector<32x512xf32>
    %c15_i32 = arith.constant 15 : i32
    %10 = tpu.dynamic_rotate %1 by %c15_i32 dim 1 : vector<32x512xf32>, i32 -> vector<32x512xf32>
    %11 = vector.extract_strided_slice %0 {offsets = [2, 0], sizes = [1, 512], strides = [1, 1]} : vector<8x512xf32> to vector<1x512xf32>
    %12 = vector.broadcast %11 : vector<1x512xf32> to vector<32x512xf32>
    %13 = arith.mulf %10, %12 : vector<32x512xf32>
    %c1_i32 = arith.constant 1 : i32
    %14 = tpu.dynamic_rotate %1 by %c1_i32 dim 1 : vector<32x512xf32>, i32 -> vector<32x512xf32>
    %15 = vector.extract_strided_slice %0 {offsets = [3, 0], sizes = [1, 512], strides = [1, 1]} : vector<8x512xf32> to vector<1x512xf32>
    %16 = vector.broadcast %15 : vector<1x512xf32> to vector<32x512xf32>
    %17 = arith.mulf %14, %16 : vector<32x512xf32>
    %c511_i32 = arith.constant 511 : i32
    %18 = tpu.dynamic_rotate %1 by %c511_i32 dim 1 : vector<32x512xf32>, i32 -> vector<32x512xf32>
    %19 = vector.extract_strided_slice %0 {offsets = [4, 0], sizes = [1, 512], strides = [1, 1]} : vector<8x512xf32> to vector<1x512xf32>
    %20 = vector.broadcast %19 : vector<1x512xf32> to vector<32x512xf32>
    %21 = arith.mulf %18, %20 : vector<32x512xf32>
    %c497_i32 = arith.constant 497 : i32
    %22 = tpu.dynamic_rotate %1 by %c497_i32 dim 1 : vector<32x512xf32>, i32 -> vector<32x512xf32>
    %23 = vector.extract_strided_slice %0 {offsets = [5, 0], sizes = [1, 512], strides = [1, 1]} : vector<8x512xf32> to vector<1x512xf32>
    %24 = vector.broadcast %23 : vector<1x512xf32> to vector<32x512xf32>
    %25 = arith.mulf %22, %24 : vector<32x512xf32>
    %c496_i32 = arith.constant 496 : i32
    %26 = tpu.dynamic_rotate %1 by %c496_i32 dim 1 : vector<32x512xf32>, i32 -> vector<32x512xf32>
    %27 = vector.extract_strided_slice %0 {offsets = [6, 0], sizes = [1, 512], strides = [1, 1]} : vector<8x512xf32> to vector<1x512xf32>
    %28 = vector.broadcast %27 : vector<1x512xf32> to vector<32x512xf32>
    %29 = arith.mulf %26, %28 : vector<32x512xf32>
    %c495_i32 = arith.constant 495 : i32
    %30 = tpu.dynamic_rotate %1 by %c495_i32 dim 1 : vector<32x512xf32>, i32 -> vector<32x512xf32>
    %31 = vector.extract_strided_slice %0 {offsets = [7, 0], sizes = [1, 512], strides = [1, 1]} : vector<8x512xf32> to vector<1x512xf32>
    %32 = vector.broadcast %31 : vector<1x512xf32> to vector<32x512xf32>
    %33 = arith.mulf %30, %32 : vector<32x512xf32>
    %34 = tpu.concatenate %5, %9, %13, %17, %1, %21, %25, %29, %33 in 0 : vector<32x512xf32>, vector<32x512xf32>, vector<32x512xf32>, vector<32x512xf32>, vector<32x512xf32>, vector<32x512xf32>, vector<32x512xf32>, vector<32x512xf32>, vector<32x512xf32> -> vector<288x512xf32>
    %c0_3 = arith.constant 0 : index
    %c0_4 = arith.constant 0 : index
    %35 = vector.load %arg3[%c0_3, %c0_4] : memref<8x288xf32, #tpu.memory_space<vmem>>, vector<8x288xf32>
    %cst = arith.constant dense<0.000000e+00> : vector<8x512xf32>
    %36 = tpu.matmul %35, %34, %cst {dimension_numbers = #tpu.dot_dimension_numbers<[1], [0], [0], [1], [0, 0, 1, 1], [], []>} : vector<8x288xf32>, vector<288x512xf32>, vector<8x512xf32> -> vector<8x512xf32>
    %c0_5 = arith.constant 0 : index
    %c0_6 = arith.constant 0 : index
    %37 = vector.load %arg4[%c0_5, %c0_6] : memref<8x1xf32, #tpu.memory_space<vmem>>, vector<8x1xf32>
    %38 = vector.broadcast %37 : vector<8x1xf32> to vector<8x512xf32>
    %39 = arith.addf %36, %38 : vector<8x512xf32>
    %c0_7 = arith.constant 0 : index
    %c0_8 = arith.constant 0 : index
    %40 = memref.load %arg8[%c0_7, %c0_8] : memref<1x3xf32, #tpu.memory_space<smem>>
    %cst_9 = arith.constant 0.000000e+00 : f32
    %41 = vector.broadcast %cst_9 : f32 to vector<8x512xf32>
    %42 = arith.cmpf oge, %39, %41 : vector<8x512xf32>
    %43 = vector.broadcast %40 : f32 to vector<8x512xf32>
    %44 = arith.mulf %43, %39 : vector<8x512xf32>
    %45 = arith.select %42, %39, %44 : vector<8x512xi1>, vector<8x512xf32>
    %c17_i32_10 = arith.constant 17 : i32
    %46 = tpu.dynamic_rotate %45 by %c17_i32_10 dim 1 : vector<8x512xf32>, i32 -> vector<8x512xf32>
    %47 = vector.extract_strided_slice %0 {offsets = [0, 0], sizes = [1, 512], strides = [1, 1]} : vector<8x512xf32> to vector<1x512xf32>
    %48 = vector.broadcast %47 : vector<1x512xf32> to vector<8x512xf32>
    %49 = arith.mulf %46, %48 : vector<8x512xf32>
    %c16_i32_11 = arith.constant 16 : i32
    %50 = tpu.dynamic_rotate %45 by %c16_i32_11 dim 1 : vector<8x512xf32>, i32 -> vector<8x512xf32>
    %51 = vector.extract_strided_slice %0 {offsets = [1, 0], sizes = [1, 512], strides = [1, 1]} : vector<8x512xf32> to vector<1x512xf32>
    %52 = vector.broadcast %51 : vector<1x512xf32> to vector<8x512xf32>
    %53 = arith.mulf %50, %52 : vector<8x512xf32>
    %c15_i32_12 = arith.constant 15 : i32
    %54 = tpu.dynamic_rotate %45 by %c15_i32_12 dim 1 : vector<8x512xf32>, i32 -> vector<8x512xf32>
    %55 = vector.extract_strided_slice %0 {offsets = [2, 0], sizes = [1, 512], strides = [1, 1]} : vector<8x512xf32> to vector<1x512xf32>
    %56 = vector.broadcast %55 : vector<1x512xf32> to vector<8x512xf32>
    %57 = arith.mulf %54, %56 : vector<8x512xf32>
    %c1_i32_13 = arith.constant 1 : i32
    %58 = tpu.dynamic_rotate %45 by %c1_i32_13 dim 1 : vector<8x512xf32>, i32 -> vector<8x512xf32>
    %59 = vector.extract_strided_slice %0 {offsets = [3, 0], sizes = [1, 512], strides = [1, 1]} : vector<8x512xf32> to vector<1x512xf32>
    %60 = vector.broadcast %59 : vector<1x512xf32> to vector<8x512xf32>
    %61 = arith.mulf %58, %60 : vector<8x512xf32>
    %c511_i32_14 = arith.constant 511 : i32
    %62 = tpu.dynamic_rotate %45 by %c511_i32_14 dim 1 : vector<8x512xf32>, i32 -> vector<8x512xf32>
    %63 = vector.extract_strided_slice %0 {offsets = [4, 0], sizes = [1, 512], strides = [1, 1]} : vector<8x512xf32> to vector<1x512xf32>
    %64 = vector.broadcast %63 : vector<1x512xf32> to vector<8x512xf32>
    %65 = arith.mulf %62, %64 : vector<8x512xf32>
    %c497_i32_15 = arith.constant 497 : i32
    %66 = tpu.dynamic_rotate %45 by %c497_i32_15 dim 1 : vector<8x512xf32>, i32 -> vector<8x512xf32>
    %67 = vector.extract_strided_slice %0 {offsets = [5, 0], sizes = [1, 512], strides = [1, 1]} : vector<8x512xf32> to vector<1x512xf32>
    %68 = vector.broadcast %67 : vector<1x512xf32> to vector<8x512xf32>
    %69 = arith.mulf %66, %68 : vector<8x512xf32>
    %c496_i32_16 = arith.constant 496 : i32
    %70 = tpu.dynamic_rotate %45 by %c496_i32_16 dim 1 : vector<8x512xf32>, i32 -> vector<8x512xf32>
    %71 = vector.extract_strided_slice %0 {offsets = [6, 0], sizes = [1, 512], strides = [1, 1]} : vector<8x512xf32> to vector<1x512xf32>
    %72 = vector.broadcast %71 : vector<1x512xf32> to vector<8x512xf32>
    %73 = arith.mulf %70, %72 : vector<8x512xf32>
    %c495_i32_17 = arith.constant 495 : i32
    %74 = tpu.dynamic_rotate %45 by %c495_i32_17 dim 1 : vector<8x512xf32>, i32 -> vector<8x512xf32>
    %75 = vector.extract_strided_slice %0 {offsets = [7, 0], sizes = [1, 512], strides = [1, 1]} : vector<8x512xf32> to vector<1x512xf32>
    %76 = vector.broadcast %75 : vector<1x512xf32> to vector<8x512xf32>
    %77 = arith.mulf %74, %76 : vector<8x512xf32>
    %78 = tpu.concatenate %49, %53, %57, %61, %45, %65, %69, %73, %77 in 0 : vector<8x512xf32>, vector<8x512xf32>, vector<8x512xf32>, vector<8x512xf32>, vector<8x512xf32>, vector<8x512xf32>, vector<8x512xf32>, vector<8x512xf32>, vector<8x512xf32> -> vector<72x512xf32>
    %c0_18 = arith.constant 0 : index
    %c0_19 = arith.constant 0 : index
    %79 = vector.load %arg5[%c0_18, %c0_19] : memref<2x72xf32, #tpu.memory_space<vmem>>, vector<2x72xf32>
    %cst_20 = arith.constant dense<0.000000e+00> : vector<2x512xf32>
    %80 = tpu.matmul %79, %78, %cst_20 {dimension_numbers = #tpu.dot_dimension_numbers<[1], [0], [0], [1], [0, 0, 1, 1], [], []>} : vector<2x72xf32>, vector<72x512xf32>, vector<2x512xf32> -> vector<2x512xf32>
    %c0_21 = arith.constant 0 : index
    %c0_22 = arith.constant 0 : index
    %81 = vector.load %arg6[%c0_21, %c0_22] : memref<2x1xf32, #tpu.memory_space<vmem>>, vector<2x1xf32>
    %82 = vector.broadcast %81 : vector<2x1xf32> to vector<2x512xf32>
    %83 = arith.addf %80, %82 : vector<2x512xf32>
    %c0_23 = arith.constant 0 : index
    %c1 = arith.constant 1 : index
    %84 = memref.load %arg8[%c0_23, %c1] : memref<1x3xf32, #tpu.memory_space<smem>>
    %cst_24 = arith.constant 0.000000e+00 : f32
    %85 = vector.broadcast %cst_24 : f32 to vector<2x512xf32>
    %86 = arith.cmpf oge, %83, %85 : vector<2x512xf32>
    %87 = vector.broadcast %84 : f32 to vector<2x512xf32>
    %88 = arith.mulf %87, %83 : vector<2x512xf32>
    %89 = arith.select %86, %83, %88 : vector<2x512xi1>, vector<2x512xf32>
    %c0_25 = arith.constant 0 : index
    %c0_26 = arith.constant 0 : index
    %90 = vector.load %arg7[%c0_25, %c0_26] : memref<2x1xf32, #tpu.memory_space<vmem>>, vector<2x1xf32>
    %91 = vector.broadcast %90 : vector<2x1xf32> to vector<2x512xf32>
    %92 = arith.mulf %89, %91 : vector<2x512xf32>
    %cst_27 = arith.constant dense<0.000000e+00> : vector<512xf32>
    %93 = vector.multi_reduction <add>, %92, %cst_27 [0] : vector<2x512xf32> to vector<512xf32>
    %94 = vector.shape_cast %93 : vector<512xf32> to vector<1x512xf32>
    %c0_28 = arith.constant 0 : index
    %c2 = arith.constant 2 : index
    %95 = memref.load %arg8[%c0_28, %c2] : memref<1x3xf32, #tpu.memory_space<smem>>
    %96 = vector.broadcast %95 : f32 to vector<1x512xf32>
    %97 = arith.addf %94, %96 : vector<1x512xf32>
    %98 = arith.negf %97 : vector<1x512xf32>
    %99 = math.exp %98 : vector<1x512xf32>
    %cst_29 = arith.constant 1.000000e+00 : f32
    %100 = vector.broadcast %cst_29 : f32 to vector<1x512xf32>
    %101 = arith.addf %100, %99 : vector<1x512xf32>
    %102 = arith.divf %100, %101 : vector<1x512xf32>
    %c0_30 = arith.constant 0 : index
    %c0_31 = arith.constant 0 : index
    %103 = vector.load %arg9[%c0_30, %c0_31] : memref<1x512xf32, #tpu.memory_space<vmem>>, vector<1x512xf32>
    tpu.vector_store %arg9[%c0_30, %c0_31], %102 {strides = array<i32>} : memref<1x512xf32, #tpu.memory_space<vmem>>, vector<1x512xf32>,
    return
  }
  func.func @transform_0(%arg0: i32) -> (i32, i32) {
    %c0_i32 = arith.constant 0 : i32
    %c0_i32_0 = arith.constant 0 : i32
    %c0_i32_1 = arith.constant 0 : i32
    return %c0_i32, %c0_i32_0 : i32, i32
  }
  func.func @transform_1(%arg0: i32) -> (i32, i32) {
    %c0_i32 = arith.constant 0 : i32
    %c0_i32_0 = arith.constant 0 : i32
    %c0_i32_1 = arith.constant 0 : i32
    return %c0_i32, %c0_i32_0 : i32, i32
  }
  func.func @transform_2(%arg0: i32) -> (i32, i32) {
    %c0_i32 = arith.constant 0 : i32
    %c0_i32_0 = arith.constant 0 : i32
    %c0_i32_1 = arith.constant 0 : i32
    return %c0_i32, %c0_i32_0 : i32, i32
  }
  func.func @transform_3(%arg0: i32) -> (i32, i32) {
    %c0_i32 = arith.constant 0 : i32
    %c0_i32_0 = arith.constant 0 : i32
    %c0_i32_1 = arith.constant 0 : i32
    return %c0_i32, %c0_i32_0 : i32, i32
  }
  func.func @transform_4(%arg0: i32) -> (i32, i32) {
    %c0_i32 = arith.constant 0 : i32
    %c0_i32_0 = arith.constant 0 : i32
    %c0_i32_1 = arith.constant 0 : i32
    return %c0_i32, %c0_i32_0 : i32, i32
  }
  func.func @transform_5(%arg0: i32) -> (i32, i32) {
    %c0_i32 = arith.constant 0 : i32
    %c0_i32_0 = arith.constant 0 : i32
    %c0_i32_1 = arith.constant 0 : i32
    return %c0_i32, %c0_i32_0 : i32, i32
  }
  func.func @transform_6(%arg0: i32) -> (i32, i32) {
    %c0_i32 = arith.constant 0 : i32
    %c0_i32_0 = arith.constant 0 : i32
    %c0_i32_1 = arith.constant 0 : i32
    return %c0_i32, %c0_i32_0 : i32, i32
  }
  func.func @transform_7(%arg0: i32) -> (i32, i32) {
    %c0_i32 = arith.constant 0 : i32
    %c0_i32_0 = arith.constant 0 : i32
    %c0_i32_1 = arith.constant 0 : i32
    return %c0_i32, %c0_i32_0 : i32, i32
  }
  func.func @transform_8(%arg0: i32) -> (i32, i32) {
    %c0_i32 = arith.constant 0 : i32
    %c0_i32_0 = arith.constant 0 : i32
    %c0_i32_1 = arith.constant 0 : i32
    return %c0_i32, %c0_i32_0 : i32, i32
  }
}

</mosaic_0001>

<llo_original>
// kernel: tpu_custom_call.1
$region0: #{tpu_custom_call.1}
  #allocation0 [shape = 'u32[]', space=smem, size = 0x4, offset = 0x4, fixed_abs, tag = 'smem constant byte address 0x4 - core index']
  #allocation1 [shape = 'u32[144,128]{1,0:T(1,128)}', space=vmem, size = 0x12000, scoped, tag = 'internal scratch']
  %s0 = inlined_call_operand.hbm [shape: f32[32,512], index: 0, kind: input, shape index: {}]
  %s1 = inlined_call_operand.hbm [shape: f32[8,512], index: 1, kind: input, shape index: {}]
  %s2 = inlined_call_operand.hbm [shape: f32[8,288], index: 2, kind: input, shape index: {}]
  %s3 = inlined_call_operand.vmem [shape: f32[8,1], index: 3, kind: input, shape index: {}]
  %s4 = inlined_call_operand.vmem [shape: f32[2,72], index: 4, kind: input, shape index: {}]
  %s5 = inlined_call_operand.vmem [shape: f32[2,1], index: 5, kind: input, shape index: {}]
  %s6 = inlined_call_operand.vmem [shape: f32[2,1], index: 6, kind: input, shape index: {}]
  %s7 = inlined_call_operand.vmem [shape: f32[1,3], index: 7, kind: input, shape index: {}]
  %s8 = inlined_call_operand.hbm [shape: f32[1,512], index: 8, kind: output, shape index: {}]
  %s9 = sld [smem:[#allocation0]]
  $region58: #{tpu_custom_call.1} parent=0
    _
  %s11 = ssub.s32 1, %s9
  %s12 = scalar_select 0, %s11, %s9
  $region1: #{tpu_custom_call.1} parent=0
    #allocation2 [shape = 'u8[65536]{0}', space=vmem, size = 0x10000, scoped, tag = 'input window, operand 0, single buffered']
    #allocation3 [shape = 's32[1]{0}', space=sflag, size = 0x4, scoped, tag = 'scoped memory for tpu_custom_call.1']
    #allocation4 [shape = 's32[1]{0}', space=sflag, size = 0x4, scoped, tag = 'scoped memory for tpu_custom_call.1']
    #allocation5 [shape = 's32[1]{0}', space=sflag, size = 0x4, scoped, tag = 'scoped memory for tpu_custom_call.1']
    #allocation6 [shape = 'u8[16384]{0}', space=vmem, size = 0x4000, scoped, tag = 'input window, operand 1, single buffered']
    #allocation7 [shape = 's32[1]{0}', space=sflag, size = 0x4, scoped, tag = 'scoped memory for tpu_custom_call.1']
    #allocation8 [shape = 'u8[12288]{0}', space=vmem, size = 0x3000, scoped, tag = 'input window, operand 2, single buffered']
    #allocation9 [shape = 'u8[512]{0}', space=smem, size = 0x200, scoped, tag = 'input window, operand 7, single buffered']
    #allocation10 [shape = 'u8[2048]{0}', space=vmem, size = 0x800, scoped, tag = 'output window, operand 0, single buffered']
    %13 = vsyncpa [#allocation3], 0
    %14 = vsyncpa [#allocation7], 0
    %15 = vsyncpa [#allocation5], 0
    %16 = vsyncpa [#allocation4], 0
    // Predicated region
    $region2: #{tpu_custom_call.1} parent=1 // pred_check
      _
    $region3: #{tpu_custom_call.1} parent=1 // pred_check_branch
      %18 = sbr.rel (0) target = $region5
    $region4: #{tpu_custom_call.1} parent=1 // pred_region
      %s20 = ssub.s32 2048, 2048
      %21 = vsyncadd [#allocation3], %s20
      %s22 = sshll.u32 [#allocation2], 4
      %s23 = int_to_ptr.vmem [resolvable:$true] %s22
      %28 = dma.hbm_to_vmem [thread:$0]  %s0, 2048, %s23, [#allocation3], 512, 512, 32
    $region5: #{tpu_custom_call.1} parent=1 // pred_fallthru
      _
    // Predicated region
    $region6: #{tpu_custom_call.1} parent=1 // pred_check
      _
    $region7: #{tpu_custom_call.1} parent=1 // pred_check_branch
      %30 = sbr.rel (0) target = $region9
    $region8: #{tpu_custom_call.1} parent=1 // pred_region
      %s32 = ssub.s32 512, 512
      %33 = vsyncadd [#allocation7], %s32
      %s35 = sshll.u32 [#allocation6], 4
      %s36 = int_to_ptr.vmem [resolvable:$true] %s35
      %38 = dma.hbm_to_vmem [thread:$0]  %s1, 512, %s36, [#allocation7]
    $region9: #{tpu_custom_call.1} parent=1 // pred_fallthru
      _
    // Predicated region
    $region10: #{tpu_custom_call.1} parent=1 // pred_check
      _
    $region11: #{tpu_custom_call.1} parent=1 // pred_check_branch
      %40 = sbr.rel (0) target = $region13
    $region12: #{tpu_custom_call.1} parent=1 // pred_region
      %s42 = ssub.s32 384, 384
      %43 = vsyncadd [#allocation7], %s42
      %s45 = sshll.u32 [#allocation8], 4
      %s46 = int_to_ptr.vmem [resolvable:$true] %s45
      %48 = dma.hbm_to_vmem [thread:$0]  %s2, 384, %s46, [#allocation7]
    $region13: #{tpu_custom_call.1} parent=1 // pred_fallthru
      _
    // Predicated region
    $region14: #{tpu_custom_call.1} parent=1 // pred_check
      _
    $region15: #{tpu_custom_call.1} parent=1 // pred_check_branch
      %50 = sbr.rel (0) target = $region17
    $region16: #{tpu_custom_call.1} parent=1 // pred_region
      _
    $region17: #{tpu_custom_call.1} parent=1 // pred_fallthru
      _
    // Predicated region
    $region18: #{tpu_custom_call.1} parent=1 // pred_check
      _
    $region19: #{tpu_custom_call.1} parent=1 // pred_check_branch
      %52 = sbr.rel (0) target = $region21
    $region20: #{tpu_custom_call.1} parent=1 // pred_region
      _
    $region21: #{tpu_custom_call.1} parent=1 // pred_fallthru
      _
    // Predicated region
    $region22: #{tpu_custom_call.1} parent=1 // pred_check
      _
    $region23: #{tpu_custom_call.1} parent=1 // pred_check_branch
      %54 = sbr.rel (0) target = $region25
    $region24: #{tpu_custom_call.1} parent=1 // pred_region
      _
    $region25: #{tpu_custom_call.1} parent=1 // pred_fallthru
      _
    // Predicated region
    $region26: #{tpu_custom_call.1} parent=1 // pred_check
      _
    $region27: #{tpu_custom_call.1} parent=1 // pred_check_branch
      %56 = sbr.rel (0) target = $region29
    $region28: #{tpu_custom_call.1} parent=1 // pred_region
      _
    $region29: #{tpu_custom_call.1} parent=1 // pred_fallthru
      _
    // Predicated region
    $region30: #{tpu_custom_call.1} parent=1 // pred_check
      _
    $region31: #{tpu_custom_call.1} parent=1 // pred_check_branch
      %58 = sbr.rel (0) target = $region33
    $region32: #{tpu_custom_call.1} parent=1 // pred_region
      %s60 = ssub.s32 16, 16
      %61 = vsyncadd [#allocation5], %s60
      %s63 = sshll.u32 %s7, 4
      %s64 = int_to_ptr.vmem [resolvable:$true] %s63
      %66 = dma.vmem_to_smem %s64, 16, [#allocation9], [#allocation5]
    $region33: #{tpu_custom_call.1} parent=1 // pred_fallthru
      _
    // Predicated region
    $region34: #{tpu_custom_call.1} parent=1 // pred_check
      _
    $region35: #{tpu_custom_call.1} parent=1 // pred_check_branch
      %68 = sbr.rel (0) target = $region37
    $region36: #{tpu_custom_call.1} parent=1 // pred_region
      %69 = dma.done [#allocation3], 2048
    $region37: #{tpu_custom_call.1} parent=1 // pred_fallthru
      _
    // Predicated region
    $region38: #{tpu_custom_call.1} parent=1 // pred_check
      _
    $region39: #{tpu_custom_call.1} parent=1 // pred_check_branch
      %71 = sbr.rel (0) target = $region41
    $region40: #{tpu_custom_call.1} parent=1 // pred_region
      %72 = dma.done [#allocation7], 512
    $region41: #{tpu_custom_call.1} parent=1 // pred_fallthru
      _
    // Predicated region
    $region42: #{tpu_custom_call.1} parent=1 // pred_check
      _
    $region43: #{tpu_custom_call.1} parent=1 // pred_check_branch
      %74 = sbr.rel (0) target = $region45
    $region44: #{tpu_custom_call.1} parent=1 // pred_region
      %75 = dma.done [#allocation7], 384
    $region45: #{tpu_custom_call.1} parent=1 // pred_fallthru
      _
    // Predicated region
    $region46: #{tpu_custom_call.1} parent=1 // pred_check
      _
    $region47: #{tpu_custom_call.1} parent=1 // pred_check_branch
      %77 = sbr.rel (0) target = $region49
    $region48: #{tpu_custom_call.1} parent=1 // pred_region
      %78 = dma.done [#allocation5], 16
    $region49: #{tpu_custom_call.1} parent=1 // pred_fallthru
      _
    %79 = sfence
    %v80 = vld [vmem:[#allocation6] sm:$0xff]
    %v81 = vld [vmem:[#allocation6 + $0x8] sm:$0xff]
    %v82 = vld [vmem:[#allocation6 + $0x10] sm:$0xff]
    %v83 = vld [vmem:[#allocation6 + $0x18] sm:$0xff]
    %v84 = vld [vmem:[#allocation2] sm:$0xff]
    %v85 = vld [vmem:[#allocation2 + $0x8] sm:$0xff]
    %v86 = vld [vmem:[#allocation2 + $0x10] sm:$0xff]
    %v87 = vld [vmem:[#allocation2 + $0x18] sm:$0xff]
    %v88 = vld [vmem:[#allocation2 + $0x20] sm:$0xff]
    %v89 = vld [vmem:[#allocation2 + $0x28] sm:$0xff]
    %v90 = vld [vmem:[#allocation2 + $0x30] sm:$0xff]
    %v91 = vld [vmem:[#allocation2 + $0x38] sm:$0xff]
    %v92 = vld [vmem:[#allocation2 + $0x40] sm:$0xff]
    %v93 = vld [vmem:[#allocation2 + $0x48] sm:$0xff]
    %v94 = vld [vmem:[#allocation2 + $0x50] sm:$0xff]
    %v95 = vld [vmem:[#allocation2 + $0x58] sm:$0xff]
    %v96 = vld [vmem:[#allocation2 + $0x60] sm:$0xff]
    %v97 = vld [vmem:[#allocation2 + $0x68] sm:$0xff]
    %v98 = vld [vmem:[#allocation2 + $0x70] sm:$0xff]
    %v99 = vld [vmem:[#allocation2 + $0x78] sm:$0xff]
    %100 = vrot.lane.b32.xlu0 %v84, 17
    %v101 = vpop.permute.xlu0 %100
    %102 = vrot.lane.b32.xlu0 %v88, 17
    %v103 = vpop.permute.xlu0 %102
    %104 = vrot.lane.b32.xlu0 %v92, 17
    %v105 = vpop.permute.xlu0 %104
    %106 = vrot.lane.b32.xlu0 %v96, 17
    %v107 = vpop.permute.xlu0 %106
    %108 = vrot.lane.b32.xlu0 %v85, 17
    %v109 = vpop.permute.xlu0 %108
    %110 = vrot.lane.b32.xlu0 %v89, 17
    %v111 = vpop.permute.xlu0 %110
    %112 = vrot.lane.b32.xlu0 %v93, 17
    %v113 = vpop.permute.xlu0 %112
    %114 = vrot.lane.b32.xlu0 %v97, 17
    %v115 = vpop.permute.xlu0 %114
    %116 = vrot.lane.b32.xlu0 %v86, 17
    %v117 = vpop.permute.xlu0 %116
    %118 = vrot.lane.b32.xlu0 %v90, 17
    %v119 = vpop.permute.xlu0 %118
    %120 = vrot.lane.b32.xlu0 %v94, 17
    %v121 = vpop.permute.xlu0 %120
    %122 = vrot.lane.b32.xlu0 %v98, 17
    %v123 = vpop.permute.xlu0 %122
    %124 = vrot.lane.b32.xlu0 %v87, 17
    %v125 = vpop.permute.xlu0 %124
    %126 = vrot.lane.b32.xlu0 %v91, 17
    %v127 = vpop.permute.xlu0 %126
    %128 = vrot.lane.b32.xlu0 %v95, 17
    %v129 = vpop.permute.xlu0 %128
    %130 = vrot.lane.b32.xlu0 %v99, 17
    %v131 = vpop.permute.xlu0 %130
    %v132 = vlaneseq
    %v133 = vand.u32 %v132, 127
    %vm134 = vcmp.lt.s32.totalorder %v133, 17
    %v135 = vsel %vm134, %v117, %v125
    %v136 = vsel %vm134, %v119, %v127
    %v137 = vsel %vm134, %v121, %v129
    %v138 = vsel %vm134, %v123, %v131
    %v139 = vsel %vm134, %v109, %v117
    %v140 = vsel %vm134, %v111, %v119
    %v141 = vsel %vm134, %v113, %v121
    %v142 = vsel %vm134, %v115, %v123
    %v143 = vsel %vm134, %v101, %v109
    %v144 = vsel %vm134, %v103, %v111
    %v145 = vsel %vm134, %v105, %v113
    %v146 = vsel %vm134, %v107, %v115
    %v147 = vsel %vm134, %v125, %v101
    %v148 = vsel %vm134, %v127, %v103
    %v149 = vsel %vm134, %v129, %v105
    %v150 = vsel %vm134, %v131, %v107
    %v151 = vlaneseq
    %v152 = vshrl.u32 %v151, 7
    %v153 = vsub.s32 0, %v152
    %v154 = vrot.slane %v80, %v153
    %v155 = vlaneseq
    %v156 = vshrl.u32 %v155, 7
    %v157 = vsub.s32 0, %v156
    %v158 = vrot.slane %v81, %v157
    %v159 = vlaneseq
    %v160 = vshrl.u32 %v159, 7
    %v161 = vsub.s32 0, %v160
    %v162 = vrot.slane %v82, %v161
    %v163 = vlaneseq
    %v164 = vshrl.u32 %v163, 7
    %v165 = vsub.s32 0, %v164
    %v166 = vrot.slane %v83, %v165
    %v167 = vmul.f32 %v147, %v154
    %v168 = vmul.f32 %v143, %v158
    %v169 = vmul.f32 %v139, %v162
    %v170 = vmul.f32 %v135, %v166
    %v171 = vmul.f32 %v148, %v154
    %v172 = vmul.f32 %v144, %v158
    %v173 = vmul.f32 %v140, %v162
    %v174 = vmul.f32 %v136, %v166
    %v175 = vmul.f32 %v149, %v154
    %v176 = vmul.f32 %v145, %v158
    %v177 = vmul.f32 %v141, %v162
    %v178 = vmul.f32 %v137, %v166
    %v179 = vmul.f32 %v150, %v154
    %v180 = vmul.f32 %v146, %v158
    %v181 = vmul.f32 %v142, %v162
    %v182 = vmul.f32 %v138, %v166
    %183 = vrot.lane.b32.xlu0 %v84, 16
    %v184 = vpop.permute.xlu0 %183
    %185 = vrot.lane.b32.xlu0 %v88, 16
    %v186 = vpop.permute.xlu0 %185
    %187 = vrot.lane.b32.xlu0 %v92, 16
    %v188 = vpop.permute.xlu0 %187
    %189 = vrot.lane.b32.xlu0 %v96, 16
    %v190 = vpop.permute.xlu0 %189
    %191 = vrot.lane.b32.xlu0 %v85, 16
    %v192 = vpop.permute.xlu0 %191
    %193 = vrot.lane.b32.xlu0 %v89, 16
    %v194 = vpop.permute.xlu0 %193
    %195 = vrot.lane.b32.xlu0 %v93, 16
    %v196 = vpop.permute.xlu0 %195
    %197 = vrot.lane.b32.xlu0 %v97, 16
    %v198 = vpop.permute.xlu0 %197
    %199 = vrot.lane.b32.xlu0 %v86, 16
    %v200 = vpop.permute.xlu0 %199
    %201 = vrot.lane.b32.xlu0 %v90, 16
    %v202 = vpop.permute.xlu0 %201
    %203 = vrot.lane.b32.xlu0 %v94, 16
    %v204 = vpop.permute.xlu0 %203
    %205 = vrot.lane.b32.xlu0 %v98, 16
    %v206 = vpop.permute.xlu0 %205
    %207 = vrot.lane.b32.xlu0 %v87, 16
    %v208 = vpop.permute.xlu0 %207
    %209 = vrot.lane.b32.xlu0 %v91, 16
    %v210 = vpop.permute.xlu0 %209
    %211 = vrot.lane.b32.xlu0 %v95, 16
    %v212 = vpop.permute.xlu0 %211
    %213 = vrot.lane.b32.xlu0 %v99, 16
    %v214 = vpop.permute.xlu0 %213
    %vm215 = vcmp.lt.s32.totalorder %v133, 16
    %v216 = vsel %vm215, %v200, %v208
    %v217 = vsel %vm215, %v202, %v210
    %v218 = vsel %vm215, %v204, %v212
    %v219 = vsel %vm215, %v206, %v214
    %v220 = vsel %vm215, %v192, %v200
    %v221 = vsel %vm215, %v194, %v202
    %v222 = vsel %vm215, %v196, %v204
    %v223 = vsel %vm215, %v198, %v206
    %v224 = vsel %vm215, %v184, %v192
    %v225 = vsel %vm215, %v186, %v194
    %v226 = vsel %vm215, %v188, %v196
    %v227 = vsel %vm215, %v190, %v198
    %v228 = vsel %vm215, %v208, %v184
    %v229 = vsel %vm215, %v210, %v186
    %v230 = vsel %vm215, %v212, %v188
    %v231 = vsel %vm215, %v214, %v190
    %v232 = vlaneseq
    %v233 = vshrl.u32 %v232, 7
    %v234 = vsub.s32 1, %v233
    %v235 = vrot.slane %v80, %v234
    %v236 = vlaneseq
    %v237 = vshrl.u32 %v236, 7
    %v238 = vsub.s32 1, %v237
    %v239 = vrot.slane %v81, %v238
    %v240 = vlaneseq
    %v241 = vshrl.u32 %v240, 7
    %v242 = vsub.s32 1, %v241
    %v243 = vrot.slane %v82, %v242
    %v244 = vlaneseq
    %v245 = vshrl.u32 %v244, 7
    %v246 = vsub.s32 1, %v245
    %v247 = vrot.slane %v83, %v246
    %v248 = vmul.f32 %v228, %v235
    %v249 = vmul.f32 %v224, %v239
    %v250 = vmul.f32 %v220, %v243
    %v251 = vmul.f32 %v216, %v247
    %v252 = vmul.f32 %v229, %v235
    %v253 = vmul.f32 %v225, %v239
    %v254 = vmul.f32 %v221, %v243
    %v255 = vmul.f32 %v217, %v247
    %v256 = vmul.f32 %v230, %v235
    %v257 = vmul.f32 %v226, %v239
    %v258 = vmul.f32 %v222, %v243
    %v259 = vmul.f32 %v218, %v247
    %v260 = vmul.f32 %v231, %v235
    %v261 = vmul.f32 %v227, %v239
    %v262 = vmul.f32 %v223, %v243
    %v263 = vmul.f32 %v219, %v247
    %264 = vrot.lane.b32.xlu0 %v84, 15
    %v265 = vpop.permute.xlu0 %264
    %266 = vrot.lane.b32.xlu0 %v88, 15
    %v267 = vpop.permute.xlu0 %266
    %268 = vrot.lane.b32.xlu0 %v92, 15
    %v269 = vpop.permute.xlu0 %268
    %270 = vrot.lane.b32.xlu0 %v96, 15
    %v271 = vpop.permute.xlu0 %270
    %272 = vrot.lane.b32.xlu0 %v85, 15
    %v273 = vpop.permute.xlu0 %272
    %274 = vrot.lane.b32.xlu0 %v89, 15
    %v275 = vpop.permute.xlu0 %274
    %276 = vrot.lane.b32.xlu0 %v93, 15
    %v277 = vpop.permute.xlu0 %276
    %278 = vrot.lane.b32.xlu0 %v97, 15
    %v279 = vpop.permute.xlu0 %278
    %280 = vrot.lane.b32.xlu0 %v86, 15
    %v281 = vpop.permute.xlu0 %280
    %282 = vrot.lane.b32.xlu0 %v90, 15
    %v283 = vpop.permute.xlu0 %282
    %284 = vrot.lane.b32.xlu0 %v94, 15
    %v285 = vpop.permute.xlu0 %284
    %286 = vrot.lane.b32.xlu0 %v98, 15
    %v287 = vpop.permute.xlu0 %286
    %288 = vrot.lane.b32.xlu0 %v87, 15
    %v289 = vpop.permute.xlu0 %288
    %290 = vrot.lane.b32.xlu0 %v91, 15
    %v291 = vpop.permute.xlu0 %290
    %292 = vrot.lane.b32.xlu0 %v95, 15
    %v293 = vpop.permute.xlu0 %292
    %294 = vrot.lane.b32.xlu0 %v99, 15
    %v295 = vpop.permute.xlu0 %294
    %vm296 = vcmp.lt.s32.totalorder %v133, 15
    %v297 = vsel %vm296, %v281, %v289
    %v298 = vsel %vm296, %v283, %v291
    %v299 = vsel %vm296, %v285, %v293
    %v300 = vsel %vm296, %v287, %v295
    %v301 = vsel %vm296, %v273, %v281
    %v302 = vsel %vm296, %v275, %v283
    %v303 = vsel %vm296, %v277, %v285
    %v304 = vsel %vm296, %v279, %v287
    %v305 = vsel %vm296, %v265, %v273
    %v306 = vsel %vm296, %v267, %v275
    %v307 = vsel %vm296, %v269, %v277
    %v308 = vsel %vm296, %v271, %v279
    %v309 = vsel %vm296, %v289, %v265
    %v310 = vsel %vm296, %v291, %v267
    %v311 = vsel %vm296, %v293, %v269
    %v312 = vsel %vm296, %v295, %v271
    %v313 = vlaneseq
    %v314 = vshrl.u32 %v313, 7
    %v315 = vsub.s32 2, %v314
    %v316 = vrot.slane %v80, %v315
    %v317 = vlaneseq
    %v318 = vshrl.u32 %v317, 7
    %v319 = vsub.s32 2, %v318
    %v320 = vrot.slane %v81, %v319
    %v321 = vlaneseq
    %v322 = vshrl.u32 %v321, 7
    %v323 = vsub.s32 2, %v322
    %v324 = vrot.slane %v82, %v323
    %v325 = vlaneseq
    %v326 = vshrl.u32 %v325, 7
    %v327 = vsub.s32 2, %v326
    %v328 = vrot.slane %v83, %v327
    %v329 = vmul.f32 %v309, %v316
    %v330 = vmul.f32 %v305, %v320
    %v331 = vmul.f32 %v301, %v324
    %v332 = vmul.f32 %v297, %v328
    %v333 = vmul.f32 %v310, %v316
    %v334 = vmul.f32 %v306, %v320
    %v335 = vmul.f32 %v302, %v324
    %v336 = vmul.f32 %v298, %v328
    %v337 = vmul.f32 %v311, %v316
    %v338 = vmul.f32 %v307, %v320
    %v339 = vmul.f32 %v303, %v324
    %v340 = vmul.f32 %v299, %v328
    %v341 = vmul.f32 %v312, %v316
    %v342 = vmul.f32 %v308, %v320
    %v343 = vmul.f32 %v304, %v324
    %v344 = vmul.f32 %v300, %v328
    %345 = vrot.lane.b32.xlu0 %v84, 1
    %v346 = vpop.permute.xlu0 %345
    %347 = vrot.lane.b32.xlu0 %v88, 1
    %v348 = vpop.permute.xlu0 %347
    %349 = vrot.lane.b32.xlu0 %v92, 1
    %v350 = vpop.permute.xlu0 %349
    %351 = vrot.lane.b32.xlu0 %v96, 1
    %v352 = vpop.permute.xlu0 %351
    %353 = vrot.lane.b32.xlu0 %v85, 1
    %v354 = vpop.permute.xlu0 %353
    %355 = vrot.lane.b32.xlu0 %v89, 1
    %v356 = vpop.permute.xlu0 %355
    %357 = vrot.lane.b32.xlu0 %v93, 1
    %v358 = vpop.permute.xlu0 %357
    %359 = vrot.lane.b32.xlu0 %v97, 1
    %v360 = vpop.permute.xlu0 %359
    %361 = vrot.lane.b32.xlu0 %v86, 1
    %v362 = vpop.permute.xlu0 %361
    %363 = vrot.lane.b32.xlu0 %v90, 1
    %v364 = vpop.permute.xlu0 %363
    %365 = vrot.lane.b32.xlu0 %v94, 1
    %v366 = vpop.permute.xlu0 %365
    %367 = vrot.lane.b32.xlu0 %v98, 1
    %v368 = vpop.permute.xlu0 %367
    %369 = vrot.lane.b32.xlu0 %v87, 1
    %v370 = vpop.permute.xlu0 %369
    %371 = vrot.lane.b32.xlu0 %v91, 1
    %v372 = vpop.permute.xlu0 %371
    %373 = vrot.lane.b32.xlu0 %v95, 1
    %v374 = vpop.permute.xlu0 %373
    %375 = vrot.lane.b32.xlu0 %v99, 1
    %v376 = vpop.permute.xlu0 %375
    %vm377 = vcmp.lt.s32.totalorder %v133, 1
    %v378 = vsel %vm377, %v362, %v370
    %v379 = vsel %vm377, %v364, %v372
    %v380 = vsel %vm377, %v366, %v374
    %v381 = vsel %vm377, %v368, %v376
    %v382 = vsel %vm377, %v354, %v362
    %v383 = vsel %vm377, %v356, %v364
    %v384 = vsel %vm377, %v358, %v366
    %v385 = vsel %vm377, %v360, %v368
    %v386 = vsel %vm377, %v346, %v354
    %v387 = vsel %vm377, %v348, %v356
    %v388 = vsel %vm377, %v350, %v358
    %v389 = vsel %vm377, %v352, %v360
    %v390 = vsel %vm377, %v370, %v346
    %v391 = vsel %vm377, %v372, %v348
    %v392 = vsel %vm377, %v374, %v350
    %v393 = vsel %vm377, %v376, %v352
    %v394 = vlaneseq
    %v395 = vshrl.u32 %v394, 7
    %v396 = vsub.s32 3, %v395
    %v397 = vrot.slane %v80, %v396
    %v398 = vlaneseq
    %v399 = vshrl.u32 %v398, 7
    %v400 = vsub.s32 3, %v399
    %v401 = vrot.slane %v81, %v400
    %v402 = vlaneseq
    %v403 = vshrl.u32 %v402, 7
    %v404 = vsub.s32 3, %v403
    %v405 = vrot.slane %v82, %v404
    %v406 = vlaneseq
    %v407 = vshrl.u32 %v406, 7
    %v408 = vsub.s32 3, %v407
    %v409 = vrot.slane %v83, %v408
    %v410 = vmul.f32 %v390, %v397
    %v411 = vmul.f32 %v386, %v401
    %v412 = vmul.f32 %v382, %v405
    %v413 = vmul.f32 %v378, %v409
    %v414 = vmul.f32 %v391, %v397
    %v415 = vmul.f32 %v387, %v401
    %v416 = vmul.f32 %v383, %v405
    %v417 = vmul.f32 %v379, %v409
    %v418 = vmul.f32 %v392, %v397
    %v419 = vmul.f32 %v388, %v401
    %v420 = vmul.f32 %v384, %v405
    %v421 = vmul.f32 %v380, %v409
    %v422 = vmul.f32 %v393, %v397
    %v423 = vmul.f32 %v389, %v401
    %v424 = vmul.f32 %v385, %v405
    %v425 = vmul.f32 %v381, %v409
    %426 = vrot.lane.b32.xlu0 %v84, 127
    %v427 = vpop.permute.xlu0 %426
    %428 = vrot.lane.b32.xlu0 %v88, 127
    %v429 = vpop.permute.xlu0 %428
    %430 = vrot.lane.b32.xlu0 %v92, 127
    %v431 = vpop.permute.xlu0 %430
    %432 = vrot.lane.b32.xlu0 %v96, 127
    %v433 = vpop.permute.xlu0 %432
    %434 = vrot.lane.b32.xlu0 %v85, 127
    %v435 = vpop.permute.xlu0 %434
    %436 = vrot.lane.b32.xlu0 %v89, 127
    %v437 = vpop.permute.xlu0 %436
    %438 = vrot.lane.b32.xlu0 %v93, 127
    %v439 = vpop.permute.xlu0 %438
    %440 = vrot.lane.b32.xlu0 %v97, 127
    %v441 = vpop.permute.xlu0 %440
    %442 = vrot.lane.b32.xlu0 %v86, 127
    %v443 = vpop.permute.xlu0 %442
    %444 = vrot.lane.b32.xlu0 %v90, 127
    %v445 = vpop.permute.xlu0 %444
    %446 = vrot.lane.b32.xlu0 %v94, 127
    %v447 = vpop.permute.xlu0 %446
    %448 = vrot.lane.b32.xlu0 %v98, 127
    %v449 = vpop.permute.xlu0 %448
    %450 = vrot.lane.b32.xlu0 %v87, 127
    %v451 = vpop.permute.xlu0 %450
    %452 = vrot.lane.b32.xlu0 %v91, 127
    %v453 = vpop.permute.xlu0 %452
    %454 = vrot.lane.b32.xlu0 %v95, 127
    %v455 = vpop.permute.xlu0 %454
    %456 = vrot.lane.b32.xlu0 %v99, 127
    %v457 = vpop.permute.xlu0 %456
    %vm458 = vcmp.lt.s32.totalorder %v133, 127
    %v459 = vsel %vm458, %v443, %v451
    %v460 = vsel %vm458, %v445, %v453
    %v461 = vsel %vm458, %v447, %v455
    %v462 = vsel %vm458, %v449, %v457
    %v463 = vsel %vm458, %v435, %v443
    %v464 = vsel %vm458, %v437, %v445
    %v465 = vsel %vm458, %v439, %v447
    %v466 = vsel %vm458, %v441, %v449
    %v467 = vsel %vm458, %v427, %v435
    %v468 = vsel %vm458, %v429, %v437
    %v469 = vsel %vm458, %v431, %v439
    %v470 = vsel %vm458, %v433, %v441
    %v471 = vsel %vm458, %v451, %v427
    %v472 = vsel %vm458, %v453, %v429
    %v473 = vsel %vm458, %v455, %v431
    %v474 = vsel %vm458, %v457, %v433
    %v475 = vlaneseq
    %v476 = vshrl.u32 %v475, 7
    %v477 = vsub.s32 4, %v476
    %v478 = vrot.slane %v80, %v477
    %v479 = vlaneseq
    %v480 = vshrl.u32 %v479, 7
    %v481 = vsub.s32 4, %v480
    %v482 = vrot.slane %v81, %v481
    %v483 = vlaneseq
    %v484 = vshrl.u32 %v483, 7
    %v485 = vsub.s32 4, %v484
    %v486 = vrot.slane %v82, %v485
    %v487 = vlaneseq
    %v488 = vshrl.u32 %v487, 7
    %v489 = vsub.s32 4, %v488
    %v490 = vrot.slane %v83, %v489
    %v491 = vmul.f32 %v467, %v478
    %v492 = vmul.f32 %v463, %v482
    %v493 = vmul.f32 %v459, %v486
    %v494 = vmul.f32 %v471, %v490
    %v495 = vmul.f32 %v468, %v478
    %v496 = vmul.f32 %v464, %v482
    %v497 = vmul.f32 %v460, %v486
    %v498 = vmul.f32 %v472, %v490
    %v499 = vmul.f32 %v469, %v478
    %v500 = vmul.f32 %v465, %v482
    %v501 = vmul.f32 %v461, %v486
    %v502 = vmul.f32 %v473, %v490
    %v503 = vmul.f32 %v470, %v478
    %v504 = vmul.f32 %v466, %v482
    %v505 = vmul.f32 %v462, %v486
    %v506 = vmul.f32 %v474, %v490
    %507 = vrot.lane.b32.xlu0 %v84, 113
    %v508 = vpop.permute.xlu0 %507
    %509 = vrot.lane.b32.xlu0 %v88, 113
    %v510 = vpop.permute.xlu0 %509
    %511 = vrot.lane.b32.xlu0 %v92, 113
    %v512 = vpop.permute.xlu0 %511
    %513 = vrot.lane.b32.xlu0 %v96, 113
    %v514 = vpop.permute.xlu0 %513
    %515 = vrot.lane.b32.xlu0 %v85, 113
    %v516 = vpop.permute.xlu0 %515
    %517 = vrot.lane.b32.xlu0 %v89, 113
    %v518 = vpop.permute.xlu0 %517
    %519 = vrot.lane.b32.xlu0 %v93, 113
    %v520 = vpop.permute.xlu0 %519
    %521 = vrot.lane.b32.xlu0 %v97, 113
    %v522 = vpop.permute.xlu0 %521
    %523 = vrot.lane.b32.xlu0 %v86, 113
    %v524 = vpop.permute.xlu0 %523
    %525 = vrot.lane.b32.xlu0 %v90, 113
    %v526 = vpop.permute.xlu0 %525
    %527 = vrot.lane.b32.xlu0 %v94, 113
    %v528 = vpop.permute.xlu0 %527
    %529 = vrot.lane.b32.xlu0 %v98, 113
    %v530 = vpop.permute.xlu0 %529
    %531 = vrot.lane.b32.xlu0 %v87, 113
    %v532 = vpop.permute.xlu0 %531
    %533 = vrot.lane.b32.xlu0 %v91, 113
    %v534 = vpop.permute.xlu0 %533
    %535 = vrot.lane.b32.xlu0 %v95, 113
    %v536 = vpop.permute.xlu0 %535
    %537 = vrot.lane.b32.xlu0 %v99, 113
    %v538 = vpop.permute.xlu0 %537
    %vm539 = vcmp.lt.s32.totalorder %v133, 113
    %v540 = vsel %vm539, %v524, %v532
    %v541 = vsel %vm539, %v526, %v534
    %v542 = vsel %vm539, %v528, %v536
    %v543 = vsel %vm539, %v530, %v538
    %v544 = vsel %vm539, %v516, %v524
    %v545 = vsel %vm539, %v518, %v526
    %v546 = vsel %vm539, %v520, %v528
    %v547 = vsel %vm539, %v522, %v530
    %v548 = vsel %vm539, %v508, %v516
    %v549 = vsel %vm539, %v510, %v518
    %v550 = vsel %vm539, %v512, %v520
    %v551 = vsel %vm539, %v514, %v522
    %v552 = vsel %vm539, %v532, %v508
    %v553 = vsel %vm539, %v534, %v510
    %v554 = vsel %vm539, %v536, %v512
    %v555 = vsel %vm539, %v538, %v514
    %v556 = vlaneseq
    %v557 = vshrl.u32 %v556, 7
    %v558 = vsub.s32 5, %v557
    %v559 = vrot.slane %v80, %v558
    %v560 = vlaneseq
    %v561 = vshrl.u32 %v560, 7
    %v562 = vsub.s32 5, %v561
    %v563 = vrot.slane %v81, %v562
    %v564 = vlaneseq
    %v565 = vshrl.u32 %v564, 7
    %v566 = vsub.s32 5, %v565
    %v567 = vrot.slane %v82, %v566
    %v568 = vlaneseq
    %v569 = vshrl.u32 %v568, 7
    %v570 = vsub.s32 5, %v569
    %v571 = vrot.slane %v83, %v570
    %v572 = vmul.f32 %v548, %v559
    %v573 = vmul.f32 %v544, %v563
    %v574 = vmul.f32 %v540, %v567
    %v575 = vmul.f32 %v552, %v571
    %v576 = vmul.f32 %v549, %v559
    %v577 = vmul.f32 %v545, %v563
    %v578 = vmul.f32 %v541, %v567
    %v579 = vmul.f32 %v553, %v571
    %v580 = vmul.f32 %v550, %v559
    %v581 = vmul.f32 %v546, %v563
    %v582 = vmul.f32 %v542, %v567
    %v583 = vmul.f32 %v554, %v571
    %v584 = vmul.f32 %v551, %v559
    %v585 = vmul.f32 %v547, %v563
    %v586 = vmul.f32 %v543, %v567
    %v587 = vmul.f32 %v555, %v571
    %588 = vrot.lane.b32.xlu0 %v84, 112
    %v589 = vpop.permute.xlu0 %588
    %590 = vrot.lane.b32.xlu0 %v88, 112
    %v591 = vpop.permute.xlu0 %590
    %592 = vrot.lane.b32.xlu0 %v92, 112
    %v593 = vpop.permute.xlu0 %592
    %594 = vrot.lane.b32.xlu0 %v96, 112
    %v595 = vpop.permute.xlu0 %594
    %596 = vrot.lane.b32.xlu0 %v85, 112
    %v597 = vpop.permute.xlu0 %596
    %598 = vrot.lane.b32.xlu0 %v89, 112
    %v599 = vpop.permute.xlu0 %598
    %600 = vrot.lane.b32.xlu0 %v93, 112
    %v601 = vpop.permute.xlu0 %600
    %602 = vrot.lane.b32.xlu0 %v97, 112
    %v603 = vpop.permute.xlu0 %602
    %604 = vrot.lane.b32.xlu0 %v86, 112
    %v605 = vpop.permute.xlu0 %604
    %606 = vrot.lane.b32.xlu0 %v90, 112
    %v607 = vpop.permute.xlu0 %606
    %608 = vrot.lane.b32.xlu0 %v94, 112
    %v609 = vpop.permute.xlu0 %608
    %610 = vrot.lane.b32.xlu0 %v98, 112
    %v611 = vpop.permute.xlu0 %610
    %612 = vrot.lane.b32.xlu0 %v87, 112
    %v613 = vpop.permute.xlu0 %612
    %614 = vrot.lane.b32.xlu0 %v91, 112
    %v615 = vpop.permute.xlu0 %614
    %616 = vrot.lane.b32.xlu0 %v95, 112
    %v617 = vpop.permute.xlu0 %616
    %618 = vrot.lane.b32.xlu0 %v99, 112
    %v619 = vpop.permute.xlu0 %618
    %vm620 = vcmp.lt.s32.totalorder %v133, 112
    %v621 = vsel %vm620, %v605, %v613
    %v622 = vsel %vm620, %v607, %v615
    %v623 = vsel %vm620, %v609, %v617
    %v624 = vsel %vm620, %v611, %v619
    %v625 = vsel %vm620, %v597, %v605
    %v626 = vsel %vm620, %v599, %v607
    %v627 = vsel %vm620, %v601, %v609
    %v628 = vsel %vm620, %v603, %v611
    %v629 = vsel %vm620, %v589, %v597
    %v630 = vsel %vm620, %v591, %v599
    %v631 = vsel %vm620, %v593, %v601
    %v632 = vsel %vm620, %v595, %v603
    %v633 = vsel %vm620, %v613, %v589
    %v634 = vsel %vm620, %v615, %v591
    %v635 = vsel %vm620, %v617, %v593
    %v636 = vsel %vm620, %v619, %v595
    %v637 = vlaneseq
    %v638 = vshrl.u32 %v637, 7
    %v639 = vsub.s32 6, %v638
    %v640 = vrot.slane %v80, %v639
    %v641 = vlaneseq
    %v642 = vshrl.u32 %v641, 7
    %v643 = vsub.s32 6, %v642
    %v644 = vrot.slane %v81, %v643
    %v645 = vlaneseq
    %v646 = vshrl.u32 %v645, 7
    %v647 = vsub.s32 6, %v646
    %v648 = vrot.slane %v82, %v647
    %v649 = vlaneseq
    %v650 = vshrl.u32 %v649, 7
    %v651 = vsub.s32 6, %v650
    %v652 = vrot.slane %v83, %v651
    %v653 = vmul.f32 %v629, %v640
    %v654 = vmul.f32 %v625, %v644
    %v655 = vmul.f32 %v621, %v648
    %v656 = vmul.f32 %v633, %v652
    %v657 = vmul.f32 %v630, %v640
    %v658 = vmul.f32 %v626, %v644
    %v659 = vmul.f32 %v622, %v648
    %v660 = vmul.f32 %v634, %v652
    %v661 = vmul.f32 %v631, %v640
    %v662 = vmul.f32 %v627, %v644
    %v663 = vmul.f32 %v623, %v648
    %v664 = vmul.f32 %v635, %v652
    %v665 = vmul.f32 %v632, %v640
    %v666 = vmul.f32 %v628, %v644
    %v667 = vmul.f32 %v624, %v648
    %v668 = vmul.f32 %v636, %v652
    %669 = vrot.lane.b32.xlu0 %v84, 111
    %v670 = vpop.permute.xlu0 %669
    %671 = vrot.lane.b32.xlu0 %v88, 111
    %v672 = vpop.permute.xlu0 %671
    %673 = vrot.lane.b32.xlu0 %v92, 111
    %v674 = vpop.permute.xlu0 %673
    %675 = vrot.lane.b32.xlu0 %v96, 111
    %v676 = vpop.permute.xlu0 %675
    %677 = vrot.lane.b32.xlu0 %v85, 111
    %v678 = vpop.permute.xlu0 %677
    %679 = vrot.lane.b32.xlu0 %v89, 111
    %v680 = vpop.permute.xlu0 %679
    %681 = vrot.lane.b32.xlu0 %v93, 111
    %v682 = vpop.permute.xlu0 %681
    %683 = vrot.lane.b32.xlu0 %v97, 111
    %v684 = vpop.permute.xlu0 %683
    %685 = vrot.lane.b32.xlu0 %v86, 111
    %v686 = vpop.permute.xlu0 %685
    %687 = vrot.lane.b32.xlu0 %v90, 111
    %v688 = vpop.permute.xlu0 %687
    %689 = vrot.lane.b32.xlu0 %v94, 111
    %v690 = vpop.permute.xlu0 %689
    %691 = vrot.lane.b32.xlu0 %v98, 111
    %v692 = vpop.permute.xlu0 %691
    %693 = vrot.lane.b32.xlu0 %v87, 111
    %v694 = vpop.permute.xlu0 %693
    %695 = vrot.lane.b32.xlu0 %v91, 111
    %v696 = vpop.permute.xlu0 %695
    %697 = vrot.lane.b32.xlu0 %v95, 111
    %v698 = vpop.permute.xlu0 %697
    %699 = vrot.lane.b32.xlu0 %v99, 111
    %v700 = vpop.permute.xlu0 %699
    %vm701 = vcmp.lt.s32.totalorder %v133, 111
    %v702 = vsel %vm701, %v686, %v694
    %v703 = vsel %vm701, %v688, %v696
    %v704 = vsel %vm701, %v690, %v698
    %v705 = vsel %vm701, %v692, %v700
    %v706 = vsel %vm701, %v678, %v686
    %v707 = vsel %vm701, %v680, %v688
    %v708 = vsel %vm701, %v682, %v690
    %v709 = vsel %vm701, %v684, %v692
    %v710 = vsel %vm701, %v670, %v678
    %v711 = vsel %vm701, %v672, %v680
    %v712 = vsel %vm701, %v674, %v682
    %v713 = vsel %vm701, %v676, %v684
    %v714 = vsel %vm701, %v694, %v670
    %v715 = vsel %vm701, %v696, %v672
    %v716 = vsel %vm701, %v698, %v674
    %v717 = vsel %vm701, %v700, %v676
    %v718 = vlaneseq
    %v719 = vshrl.u32 %v718, 7
    %v720 = vsub.s32 7, %v719
    %v721 = vrot.slane %v80, %v720
    %v722 = vlaneseq
    %v723 = vshrl.u32 %v722, 7
    %v724 = vsub.s32 7, %v723
    %v725 = vrot.slane %v81, %v724
    %v726 = vlaneseq
    %v727 = vshrl.u32 %v726, 7
    %v728 = vsub.s32 7, %v727
    %v729 = vrot.slane %v82, %v728
    %v730 = vlaneseq
    %v731 = vshrl.u32 %v730, 7
    %v732 = vsub.s32 7, %v731
    %v733 = vrot.slane %v83, %v732
    %v734 = vmul.f32 %v710, %v721
    %v735 = vmul.f32 %v706, %v725
    %v736 = vmul.f32 %v702, %v729
    %v737 = vmul.f32 %v714, %v733
    %v738 = vmul.f32 %v711, %v721
    %v739 = vmul.f32 %v707, %v725
    %v740 = vmul.f32 %v703, %v729
    %v741 = vmul.f32 %v715, %v733
    %v742 = vmul.f32 %v712, %v721
    %v743 = vmul.f32 %v708, %v725
    %v744 = vmul.f32 %v704, %v729
    %v745 = vmul.f32 %v716, %v733
    %v746 = vmul.f32 %v713, %v721
    %v747 = vmul.f32 %v709, %v725
    %v748 = vmul.f32 %v705, %v729
    %v749 = vmul.f32 %v717, %v733
    %v750 = vld [vmem:[#allocation8] sm:$0xff]
    %v751 = vld [vmem:[#allocation8 + $0x8] sm:$0xff]
    %v752 = vld [vmem:[#allocation8 + $0x10] sm:$0xff]
    %v753 = vld [vmem:[%s3] sm:$0xff]
    %755 = vset.pattern.permute.xlu0 0
    %756 = vperm.xlu0 %755, %v753
    %v757 = vpop.permute.xlu0 %756
    %vm759 = vcmask 261120
    %v761 = vsel %vm759, %v752, 0
    %763 = vmatprep.subr.mxu0 %v423
    %764 = vmatpush1.msra.mxu0 %v422
    %765 = vmatprep.subr.mxu0 %v419
    %766 = vmatpush1.msra.mxu0 %v418
    %767 = vmatprep.subr.mxu0 %v415
    %768 = vmatpush1.msra.mxu0 %v414
    %769 = vmatprep.subr.mxu0 %v411
    %770 = vmatpush1.msra.mxu0 %v410
    %771 = vmatprep.subr.mxu0 %v342
    %772 = vmatpush1.msra.mxu0 %v341
    %773 = vmatprep.subr.mxu0 %v338
    %774 = vmatpush1.msra.mxu0 %v337
    %775 = vmatprep.subr.mxu0 %v334
    %776 = vmatpush1.msra.mxu0 %v333
    %777 = vmatprep.subr.mxu0 %v330
    %778 = vmatpush1.msra.mxu0 %v329
    %779 = vmatprep.subr.mxu0 %v261
    %780 = vmatpush1.msra.mxu0 %v260
    %781 = vmatprep.subr.mxu0 %v257
    %782 = vmatpush1.msra.mxu0 %v256
    %783 = vmatprep.subr.mxu0 %v253
    %784 = vmatpush1.msra.mxu0 %v252
    %785 = vmatprep.subr.mxu0 %v249
    %786 = vmatpush1.msra.mxu0 %v248
    %787 = vmatprep.subr.mxu0 %v180
    %788 = vmatpush1.msra.mxu0 %v179
    %789 = vmatprep.subr.mxu0 %v176
    %790 = vmatpush1.msra.mxu0 %v175
    %791 = vmatprep.subr.mxu0 %v172
    %792 = vmatpush1.msra.mxu0 %v171
    %793 = vmatprep.subr.mxu0 %v168
    %794 = vmatpush1.msra.mxu0 %v167
    %795 = vmatprep.subr.mxu0 %v666
    %796 = vmatpush2.msra.mxu0 %v665
    %797 = vmatprep.subr.mxu0 %v662
    %798 = vmatpush2.msra.mxu0 %v661
    %799 = vmatprep.subr.mxu0 %v658
    %800 = vmatpush2.msra.mxu0 %v657
    %801 = vmatprep.subr.mxu0 %v654
    %802 = vmatpush2.msra.mxu0 %v653
    %803 = vmatprep.subr.mxu0 %v585
    %804 = vmatpush2.msra.mxu0 %v584
    %805 = vmatprep.subr.mxu0 %v581
    %806 = vmatpush2.msra.mxu0 %v580
    %807 = vmatprep.subr.mxu0 %v577
    %808 = vmatpush2.msra.mxu0 %v576
    %809 = vmatprep.subr.mxu0 %v573
    %810 = vmatpush2.msra.mxu0 %v572
    %811 = vmatprep.subr.mxu0 %v504
    %812 = vmatpush2.msra.mxu0 %v503
    %813 = vmatprep.subr.mxu0 %v500
    %814 = vmatpush2.msra.mxu0 %v499
    %815 = vmatprep.subr.mxu0 %v496
    %816 = vmatpush2.msra.mxu0 %v495
    %817 = vmatprep.subr.mxu0 %v492
    %818 = vmatpush2.msra.mxu0 %v491
    %819 = vmatprep.subr.mxu0 %v97
    %820 = vmatpush2.msra.mxu0 %v96
    %821 = vmatprep.subr.mxu0 %v93
    %822 = vmatpush2.msra.mxu0 %v92
    %823 = vmatprep.subr.mxu0 %v89
    %824 = vmatpush2.msra.mxu0 %v88
    %825 = vmatprep.subr.mxu0 %v85
    %826 = vmatpush2.msra.mxu0 %v84
    %827 = vmatprep.mubr.f32.mxu0 %v751
    %828 = vmatmul.mubr.f32.gmra.mxu0 %v750
    %v829 = vpop.f32.mrf.mxu0
    %v830 = vadd.f32 %v757, %v829
    %v831 = vpop.f32.mrf.mxu0
    %v832 = vadd.f32 %v757, %v831
    %833 = vdwg.mxu0
    %834 = vmatprep.subr.mxu0 0.0
    %835 = vmatpush1.msra.mxu0 0.0
    %836 = vmatprep.subr.mxu0 0.0
    %837 = vmatpush1.msra.mxu0 0.0
    %838 = vmatprep.subr.mxu0 0.0
    %839 = vmatpush1.msra.mxu0 0.0
    %840 = vmatprep.subr.mxu0 0.0
    %841 = vmatpush1.msra.mxu0 0.0
    %842 = vmatprep.subr.mxu0 0.0
    %843 = vmatpush1.msra.mxu0 0.0
    %844 = vmatprep.subr.mxu0 0.0
    %845 = vmatpush1.msra.mxu0 0.0
    %846 = vmatprep.subr.mxu0 0.0
    %847 = vmatpush1.msra.mxu0 0.0
    %848 = vmatprep.subr.mxu0 0.0
    %849 = vmatpush1.msra.mxu0 0.0
    %850 = vmatprep.subr.mxu0 0.0
    %851 = vmatpush1.msra.mxu0 0.0
    %852 = vmatprep.subr.mxu0 0.0
    %853 = vmatpush1.msra.mxu0 0.0
    %854 = vmatprep.subr.mxu0 0.0
    %855 = vmatpush1.msra.mxu0 0.0
    %856 = vmatprep.subr.mxu0 0.0
    %857 = vmatpush1.msra.mxu0 0.0
    %858 = vmatprep.subr.mxu0 %v747
    %859 = vmatpush1.msra.mxu0 %v746
    %860 = vmatprep.subr.mxu0 %v743
    %861 = vmatpush1.msra.mxu0 %v742
    %862 = vmatprep.subr.mxu0 %v739
    %863 = vmatpush1.msra.mxu0 %v738
    %864 = vmatprep.subr.mxu0 %v735
    %865 = vmatpush1.msra.mxu0 %v734
    %866 = vmatprep.subr.mxu0 0.0
    %867 = vmatpush2.msra.mxu0 0.0
    %868 = vmatprep.subr.mxu0 0.0
    %869 = vmatpush2.msra.mxu0 0.0
    %870 = vmatprep.subr.mxu0 0.0
    %871 = vmatpush2.msra.mxu0 0.0
    %872 = vmatprep.subr.mxu0 0.0
    %873 = vmatpush2.msra.mxu0 0.0
    %874 = vmatprep.subr.mxu0 0.0
    %875 = vmatpush2.msra.mxu0 0.0
    %876 = vmatprep.subr.mxu0 0.0
    %877 = vmatpush2.msra.mxu0 0.0
    %878 = vmatprep.subr.mxu0 0.0
    %879 = vmatpush2.msra.mxu0 0.0
    %880 = vmatprep.subr.mxu0 0.0
    %881 = vmatpush2.msra.mxu0 0.0
    %882 = vmatprep.subr.mxu0 0.0
    %883 = vmatpush2.msra.mxu0 0.0
    %884 = vmatprep.subr.mxu0 0.0
    %885 = vmatpush2.msra.mxu0 0.0
    %886 = vmatprep.subr.mxu0 0.0
    %887 = vmatpush2.msra.mxu0 0.0
    %888 = vmatprep.subr.mxu0 0.0
    %889 = vmatpush2.msra.mxu0 0.0
    %890 = vmatprep.subr.mxu0 0.0
    %891 = vmatpush2.msra.mxu0 0.0
    %892 = vmatprep.subr.mxu0 0.0
    %893 = vmatpush2.msra.mxu0 0.0
    %894 = vmatprep.subr.mxu0 0.0
    %895 = vmatpush2.msra.mxu0 0.0
    %896 = vmatprep.subr.mxu0 0.0
    %897 = vmatpush2.msra.mxu0 0.0
    %898 = vmatprep.mubr.f32.mxu0 0.0
    %899 = vmatmul.mubr.f32.gmra.mxu0 %v761
    %v900 = vpop.f32.mrf.mxu0
    %v901 = vadd.f32 %v830, %v900
    %v902 = vpop.f32.mrf.mxu0
    %v903 = vadd.f32 %v832, %v902
    %904 = vdwg.mxu0
    %905 = vmatprep.subr.mxu0 %v425
    %906 = vmatpush1.msra.mxu0 %v424
    %907 = vmatprep.subr.mxu0 %v421
    %908 = vmatpush1.msra.mxu0 %v420
    %909 = vmatprep.subr.mxu0 %v417
    %910 = vmatpush1.msra.mxu0 %v416
    %911 = vmatprep.subr.mxu0 %v413
    %912 = vmatpush1.msra.mxu0 %v412
    %913 = vmatprep.subr.mxu0 %v344
    %914 = vmatpush1.msra.mxu0 %v343
    %915 = vmatprep.subr.mxu0 %v340
    %916 = vmatpush1.msra.mxu0 %v339
    %917 = vmatprep.subr.mxu0 %v336
    %918 = vmatpush1.msra.mxu0 %v335
    %919 = vmatprep.subr.mxu0 %v332
    %920 = vmatpush1.msra.mxu0 %v331
    %921 = vmatprep.subr.mxu0 %v263
    %922 = vmatpush1.msra.mxu0 %v262
    %923 = vmatprep.subr.mxu0 %v259
    %924 = vmatpush1.msra.mxu0 %v258
    %925 = vmatprep.subr.mxu0 %v255
    %926 = vmatpush1.msra.mxu0 %v254
    %927 = vmatprep.subr.mxu0 %v251
    %928 = vmatpush1.msra.mxu0 %v250
    %929 = vmatprep.subr.mxu0 %v182
    %930 = vmatpush1.msra.mxu0 %v181
    %931 = vmatprep.subr.mxu0 %v178
    %932 = vmatpush1.msra.mxu0 %v177
    %933 = vmatprep.subr.mxu0 %v174
    %934 = vmatpush1.msra.mxu0 %v173
    %935 = vmatprep.subr.mxu0 %v170
    %936 = vmatpush1.msra.mxu0 %v169
    %937 = vmatprep.subr.mxu0 %v668
    %938 = vmatpush2.msra.mxu0 %v667
    %939 = vmatprep.subr.mxu0 %v664
    %940 = vmatpush2.msra.mxu0 %v663
    %941 = vmatprep.subr.mxu0 %v660
    %942 = vmatpush2.msra.mxu0 %v659
    %943 = vmatprep.subr.mxu0 %v656
    %944 = vmatpush2.msra.mxu0 %v655
    %945 = vmatprep.subr.mxu0 %v587
    %946 = vmatpush2.msra.mxu0 %v586
    %947 = vmatprep.subr.mxu0 %v583
    %948 = vmatpush2.msra.mxu0 %v582
    %949 = vmatprep.subr.mxu0 %v579
    %950 = vmatpush2.msra.mxu0 %v578
    %951 = vmatprep.subr.mxu0 %v575
    %952 = vmatpush2.msra.mxu0 %v574
    %953 = vmatprep.subr.mxu0 %v506
    %954 = vmatpush2.msra.mxu0 %v505
    %955 = vmatprep.subr.mxu0 %v502
    %956 = vmatpush2.msra.mxu0 %v501
    %957 = vmatprep.subr.mxu0 %v498
    %958 = vmatpush2.msra.mxu0 %v497
    %959 = vmatprep.subr.mxu0 %v494
    %960 = vmatpush2.msra.mxu0 %v493
    %961 = vmatprep.subr.mxu0 %v99
    %962 = vmatpush2.msra.mxu0 %v98
    %963 = vmatprep.subr.mxu0 %v95
    %964 = vmatpush2.msra.mxu0 %v94
    %965 = vmatprep.subr.mxu0 %v91
    %966 = vmatpush2.msra.mxu0 %v90
    %967 = vmatprep.subr.mxu0 %v87
    %968 = vmatpush2.msra.mxu0 %v86
    %969 = vmatprep.mubr.f32.mxu0 %v751
    %970 = vmatmul.mubr.f32.gmra.mxu0 %v750
    %v971 = vpop.f32.mrf.mxu0
    %v972 = vadd.f32 %v757, %v971
    %v973 = vpop.f32.mrf.mxu0
    %v974 = vadd.f32 %v757, %v973
    %975 = vdwg.mxu0
    %976 = vmatprep.subr.mxu0 0.0
    %977 = vmatpush1.msra.mxu0 0.0
    %978 = vmatprep.subr.mxu0 0.0
    %979 = vmatpush1.msra.mxu0 0.0
    %980 = vmatprep.subr.mxu0 0.0
    %981 = vmatpush1.msra.mxu0 0.0
    %982 = vmatprep.subr.mxu0 0.0
    %983 = vmatpush1.msra.mxu0 0.0
    %984 = vmatprep.subr.mxu0 0.0
    %985 = vmatpush1.msra.mxu0 0.0
    %986 = vmatprep.subr.mxu0 0.0
    %987 = vmatpush1.msra.mxu0 0.0
    %988 = vmatprep.subr.mxu0 0.0
    %989 = vmatpush1.msra.mxu0 0.0
    %990 = vmatprep.subr.mxu0 0.0
    %991 = vmatpush1.msra.mxu0 0.0
    %992 = vmatprep.subr.mxu0 0.0
    %993 = vmatpush1.msra.mxu0 0.0
    %994 = vmatprep.subr.mxu0 0.0
    %995 = vmatpush1.msra.mxu0 0.0
    %996 = vmatprep.subr.mxu0 0.0
    %997 = vmatpush1.msra.mxu0 0.0
    %998 = vmatprep.subr.mxu0 0.0
    %999 = vmatpush1.msra.mxu0 0.0
    %1000 = vmatprep.subr.mxu0 %v749
    %1001 = vmatpush1.msra.mxu0 %v748
    %1002 = vmatprep.subr.mxu0 %v745
    %1003 = vmatpush1.msra.mxu0 %v744
    %1004 = vmatprep.subr.mxu0 %v741
    %1005 = vmatpush1.msra.mxu0 %v740
    %1006 = vmatprep.subr.mxu0 %v737
    %1007 = vmatpush1.msra.mxu0 %v736
    %1008 = vmatprep.subr.mxu0 0.0
    %1009 = vmatpush2.msra.mxu0 0.0
    %1010 = vmatprep.subr.mxu0 0.0
    %1011 = vmatpush2.msra.mxu0 0.0
    %1012 = vmatprep.subr.mxu0 0.0
    %1013 = vmatpush2.msra.mxu0 0.0
    %1014 = vmatprep.subr.mxu0 0.0
    %1015 = vmatpush2.msra.mxu0 0.0
    %1016 = vmatprep.subr.mxu0 0.0
    %1017 = vmatpush2.msra.mxu0 0.0
    %1018 = vmatprep.subr.mxu0 0.0
    %1019 = vmatpush2.msra.mxu0 0.0
    %1020 = vmatprep.subr.mxu0 0.0
    %1021 = vmatpush2.msra.mxu0 0.0
    %1022 = vmatprep.subr.mxu0 0.0
    %1023 = vmatpush2.msra.mxu0 0.0
    %1024 = vmatprep.subr.mxu0 0.0
    %1025 = vmatpush2.msra.mxu0 0.0
    %1026 = vmatprep.subr.mxu0 0.0
    %1027 = vmatpush2.msra.mxu0 0.0
    %1028 = vmatprep.subr.mxu0 0.0
    %1029 = vmatpush2.msra.mxu0 0.0
    %1030 = vmatprep.subr.mxu0 0.0
    %1031 = vmatpush2.msra.mxu0 0.0
    %1032 = vmatprep.subr.mxu0 0.0
    %1033 = vmatpush2.msra.mxu0 0.0
    %1034 = vmatprep.subr.mxu0 0.0
    %1035 = vmatpush2.msra.mxu0 0.0
    %1036 = vmatprep.subr.mxu0 0.0
    %1037 = vmatpush2.msra.mxu0 0.0
    %1038 = vmatprep.subr.mxu0 0.0
    %1039 = vmatpush2.msra.mxu0 0.0
    %1040 = vmatprep.mubr.f32.mxu0 0.0
    %1041 = vmatmul.mubr.f32.gmra.mxu0 %v761
    %v1042 = vpop.f32.mrf.mxu0
    %v1043 = vadd.f32 %v972, %v1042
    %v1044 = vpop.f32.mrf.mxu0
    %v1045 = vadd.f32 %v974, %v1044
    %1046 = vdwg.mxu0
    %s1047 = sld [smem:[#allocation9]]
    %vm1048 = vcmp.ge.f32.partialorder %v901, 0.0
    %vm1049 = vcmp.ge.f32.partialorder %v903, 0.0
    %vm1050 = vcmp.ge.f32.partialorder %v1043, 0.0
    %vm1051 = vcmp.ge.f32.partialorder %v1045, 0.0
    %v1052 = vstv %s1047
    %v1053 = vmul.f32 %v1052, %v901
    %v1054 = vmul.f32 %v1052, %v903
    %v1055 = vmul.f32 %v1052, %v1043
    %v1056 = vmul.f32 %v1052, %v1045
    %v1057 = vsel %vm1048, %v901, %v1053
    %v1058 = vsel %vm1049, %v903, %v1054
    %v1059 = vsel %vm1050, %v1043, %v1055
    %v1060 = vsel %vm1051, %v1045, %v1056
    %1061 = vrot.lane.b32.xlu0 %v1057, 17
    %v1062 = vpop.permute.xlu0 %1061
    %1063 = vrot.lane.b32.xlu0 %v1058, 17
    %v1064 = vpop.permute.xlu0 %1063
    %1065 = vrot.lane.b32.xlu0 %v1059, 17
    %v1066 = vpop.permute.xlu0 %1065
    %1067 = vrot.lane.b32.xlu0 %v1060, 17
    %v1068 = vpop.permute.xlu0 %1067
    %v1069 = vsel %vm134, %v1066, %v1068
    %v1070 = vsel %vm134, %v1064, %v1066
    %v1071 = vsel %vm134, %v1062, %v1064
    %v1072 = vsel %vm134, %v1068, %v1062
    %v1073 = vmul.f32 %v1072, %v154
    %v1074 = vmul.f32 %v1071, %v158
    %v1075 = vmul.f32 %v1070, %v162
    %v1076 = vmul.f32 %v1069, %v166
    %1077 = vrot.lane.b32.xlu0 %v1057, 16
    %v1078 = vpop.permute.xlu0 %1077
    %1079 = vrot.lane.b32.xlu0 %v1058, 16
    %v1080 = vpop.permute.xlu0 %1079
    %1081 = vrot.lane.b32.xlu0 %v1059, 16
    %v1082 = vpop.permute.xlu0 %1081
    %1083 = vrot.lane.b32.xlu0 %v1060, 16
    %v1084 = vpop.permute.xlu0 %1083
    %v1085 = vsel %vm215, %v1082, %v1084
    %v1086 = vsel %vm215, %v1080, %v1082
    %v1087 = vsel %vm215, %v1078, %v1080
    %v1088 = vsel %vm215, %v1084, %v1078
    %v1089 = vmul.f32 %v1088, %v235
    %v1090 = vmul.f32 %v1087, %v239
    %v1091 = vmul.f32 %v1086, %v243
    %v1092 = vmul.f32 %v1085, %v247
    %1093 = vrot.lane.b32.xlu0 %v1057, 15
    %v1094 = vpop.permute.xlu0 %1093
    %1095 = vrot.lane.b32.xlu0 %v1058, 15
    %v1096 = vpop.permute.xlu0 %1095
    %1097 = vrot.lane.b32.xlu0 %v1059, 15
    %v1098 = vpop.permute.xlu0 %1097
    %1099 = vrot.lane.b32.xlu0 %v1060, 15
    %v1100 = vpop.permute.xlu0 %1099
    %v1101 = vsel %vm296, %v1098, %v1100
    %v1102 = vsel %vm296, %v1096, %v1098
    %v1103 = vsel %vm296, %v1094, %v1096
    %v1104 = vsel %vm296, %v1100, %v1094
    %v1105 = vmul.f32 %v1104, %v316
    %v1106 = vmul.f32 %v1103, %v320
    %v1107 = vmul.f32 %v1102, %v324
    %v1108 = vmul.f32 %v1101, %v328
    %1109 = vrot.lane.b32.xlu0 %v1057, 1
    %v1110 = vpop.permute.xlu0 %1109
    %1111 = vrot.lane.b32.xlu0 %v1058, 1
    %v1112 = vpop.permute.xlu0 %1111
    %1113 = vrot.lane.b32.xlu0 %v1059, 1
    %v1114 = vpop.permute.xlu0 %1113
    %1115 = vrot.lane.b32.xlu0 %v1060, 1
    %v1116 = vpop.permute.xlu0 %1115
    %v1117 = vsel %vm377, %v1114, %v1116
    %v1118 = vsel %vm377, %v1112, %v1114
    %v1119 = vsel %vm377, %v1110, %v1112
    %v1120 = vsel %vm377, %v1116, %v1110
    %v1121 = vmul.f32 %v1120, %v397
    %v1122 = vmul.f32 %v1119, %v401
    %v1123 = vmul.f32 %v1118, %v405
    %v1124 = vmul.f32 %v1117, %v409
    %1125 = vrot.lane.b32.xlu0 %v1057, 127
    %v1126 = vpop.permute.xlu0 %1125
    %1127 = vrot.lane.b32.xlu0 %v1058, 127
    %v1128 = vpop.permute.xlu0 %1127
    %1129 = vrot.lane.b32.xlu0 %v1059, 127
    %v1130 = vpop.permute.xlu0 %1129
    %1131 = vrot.lane.b32.xlu0 %v1060, 127
    %v1132 = vpop.permute.xlu0 %1131
    %v1133 = vsel %vm458, %v1130, %v1132
    %v1134 = vsel %vm458, %v1128, %v1130
    %v1135 = vsel %vm458, %v1126, %v1128
    %v1136 = vsel %vm458, %v1132, %v1126
    %v1137 = vmul.f32 %v1135, %v478
    %v1138 = vmul.f32 %v1134, %v482
    %v1139 = vmul.f32 %v1133, %v486
    %v1140 = vmul.f32 %v1136, %v490
    %1141 = vrot.lane.b32.xlu0 %v1057, 113
    %v1142 = vpop.permute.xlu0 %1141
    %1143 = vrot.lane.b32.xlu0 %v1058, 113
    %v1144 = vpop.permute.xlu0 %1143
    %1145 = vrot.lane.b32.xlu0 %v1059, 113
    %v1146 = vpop.permute.xlu0 %1145
    %1147 = vrot.lane.b32.xlu0 %v1060, 113
    %v1148 = vpop.permute.xlu0 %1147
    %v1149 = vsel %vm539, %v1146, %v1148
    %v1150 = vsel %vm539, %v1144, %v1146
    %v1151 = vsel %vm539, %v1142, %v1144
    %v1152 = vsel %vm539, %v1148, %v1142
    %v1153 = vmul.f32 %v1151, %v559
    %v1154 = vmul.f32 %v1150, %v563
    %v1155 = vmul.f32 %v1149, %v567
    %v1156 = vmul.f32 %v1152, %v571
    %1157 = vrot.lane.b32.xlu0 %v1057, 112
    %v1158 = vpop.permute.xlu0 %1157
    %1159 = vrot.lane.b32.xlu0 %v1058, 112
    %v1160 = vpop.permute.xlu0 %1159
    %1161 = vrot.lane.b32.xlu0 %v1059, 112
    %v1162 = vpop.permute.xlu0 %1161
    %1163 = vrot.lane.b32.xlu0 %v1060, 112
    %v1164 = vpop.permute.xlu0 %1163
    %v1165 = vsel %vm620, %v1162, %v1164
    %v1166 = vsel %vm620, %v1160, %v1162
    %v1167 = vsel %vm620, %v1158, %v1160
    %v1168 = vsel %vm620, %v1164, %v1158
    %v1169 = vmul.f32 %v1167, %v640
    %v1170 = vmul.f32 %v1166, %v644
    %v1171 = vmul.f32 %v1165, %v648
    %v1172 = vmul.f32 %v1168, %v652
    %1173 = vrot.lane.b32.xlu0 %v1057, 111
    %v1174 = vpop.permute.xlu0 %1173
    %1175 = vrot.lane.b32.xlu0 %v1058, 111
    %v1176 = vpop.permute.xlu0 %1175
    %1177 = vrot.lane.b32.xlu0 %v1059, 111
    %v1178 = vpop.permute.xlu0 %1177
    %1179 = vrot.lane.b32.xlu0 %v1060, 111
    %v1180 = vpop.permute.xlu0 %1179
    %v1181 = vsel %vm701, %v1178, %v1180
    %v1182 = vsel %vm701, %v1176, %v1178
    %v1183 = vsel %vm701, %v1174, %v1176
    %v1184 = vsel %vm701, %v1180, %v1174
    %v1185 = vmul.f32 %v1183, %v721
    %v1186 = vmul.f32 %v1182, %v725
    %v1187 = vmul.f32 %v1181, %v729
    %v1188 = vmul.f32 %v1184, %v733
    %v1189 = vld [vmem:[%s4] sm:$0x3]
    %v1190 = vld [vmem:[%s5] sm:$0x3]
    %1192 = vset.pattern.permute.xlu0 0
    %1193 = vperm.xlu0 %1192, %v1190
    %v1194 = vpop.permute.xlu0 %1193
    %vm1196 = vcmask 588800
    %v1198 = vsel %vm1196, %v1189, 0
    %1200 = vmatprep.subr.mxu0 0.0
    %1201 = vmatpush1.msra.mxu0 0.0
    %1202 = vmatprep.subr.mxu0 0.0
    %1203 = vmatpush1.msra.mxu0 0.0
    %1204 = vmatprep.subr.mxu0 0.0
    %1205 = vmatpush1.msra.mxu0 0.0
    %1206 = vmatprep.subr.mxu0 0.0
    %1207 = vmatpush1.msra.mxu0 0.0
    %1208 = vmatprep.subr.mxu0 0.0
    %1209 = vmatpush1.msra.mxu0 0.0
    %1210 = vmatprep.subr.mxu0 0.0
    %1211 = vmatpush1.msra.mxu0 0.0
    %1212 = vmatprep.subr.mxu0 0.0
    %1213 = vmatpush1.msra.mxu0 0.0
    %1214 = vmatprep.subr.mxu0 %v1186
    %1215 = vmatpush1.msra.mxu0 %v1185
    %1216 = vmatprep.subr.mxu0 %v1170
    %1217 = vmatpush1.msra.mxu0 %v1169
    %1218 = vmatprep.subr.mxu0 %v1154
    %1219 = vmatpush1.msra.mxu0 %v1153
    %1220 = vmatprep.subr.mxu0 %v1138
    %1221 = vmatpush1.msra.mxu0 %v1137
    %1222 = vmatprep.subr.mxu0 %v1058
    %1223 = vmatpush1.msra.mxu0 %v1057
    %1224 = vmatprep.subr.mxu0 %v1122
    %1225 = vmatpush1.msra.mxu0 %v1121
    %1226 = vmatprep.subr.mxu0 %v1106
    %1227 = vmatpush1.msra.mxu0 %v1105
    %1228 = vmatprep.subr.mxu0 %v1090
    %1229 = vmatpush1.msra.mxu0 %v1089
    %1230 = vmatprep.subr.mxu0 %v1074
    %1231 = vmatpush1.msra.mxu0 %v1073
    %1232 = vmatprep.subr.mxu0 0.0
    %1233 = vmatpush2.msra.mxu0 0.0
    %1234 = vmatprep.subr.mxu0 0.0
    %1235 = vmatpush2.msra.mxu0 0.0
    %1236 = vmatprep.subr.mxu0 0.0
    %1237 = vmatpush2.msra.mxu0 0.0
    %1238 = vmatprep.subr.mxu0 0.0
    %1239 = vmatpush2.msra.mxu0 0.0
    %1240 = vmatprep.subr.mxu0 0.0
    %1241 = vmatpush2.msra.mxu0 0.0
    %1242 = vmatprep.subr.mxu0 0.0
    %1243 = vmatpush2.msra.mxu0 0.0
    %1244 = vmatprep.subr.mxu0 0.0
    %1245 = vmatpush2.msra.mxu0 0.0
    %1246 = vmatprep.subr.mxu0 0.0
    %1247 = vmatpush2.msra.mxu0 0.0
    %1248 = vmatprep.subr.mxu0 0.0
    %1249 = vmatpush2.msra.mxu0 0.0
    %1250 = vmatprep.subr.mxu0 0.0
    %1251 = vmatpush2.msra.mxu0 0.0
    %1252 = vmatprep.subr.mxu0 0.0
    %1253 = vmatpush2.msra.mxu0 0.0
    %1254 = vmatprep.subr.mxu0 0.0
    %1255 = vmatpush2.msra.mxu0 0.0
    %1256 = vmatprep.subr.mxu0 0.0
    %1257 = vmatpush2.msra.mxu0 0.0
    %1258 = vmatprep.subr.mxu0 0.0
    %1259 = vmatpush2.msra.mxu0 0.0
    %1260 = vmatprep.subr.mxu0 0.0
    %1261 = vmatpush2.msra.mxu0 0.0
    %1262 = vmatprep.subr.mxu0 0.0
    %1263 = vmatpush2.msra.mxu0 0.0
    %1264 = vmatprep.mubr.f32.mxu0 0.0
    %1265 = vmatmul.mubr.f32.gmra.mxu0 %v1198
    %v1266 = vpop.f32.mrf.mxu0
    %v1267 = vadd.f32 %v1194, %v1266
    %v1268 = vpop.f32.mrf.mxu0
    %v1269 = vadd.f32 %v1194, %v1268
    %1270 = vdwg.mxu0
    %1271 = vmatprep.subr.mxu0 0.0
    %1272 = vmatpush1.msra.mxu0 0.0
    %1273 = vmatprep.subr.mxu0 0.0
    %1274 = vmatpush1.msra.mxu0 0.0
    %1275 = vmatprep.subr.mxu0 0.0
    %1276 = vmatpush1.msra.mxu0 0.0
    %1277 = vmatprep.subr.mxu0 0.0
    %1278 = vmatpush1.msra.mxu0 0.0
    %1279 = vmatprep.subr.mxu0 0.0
    %1280 = vmatpush1.msra.mxu0 0.0
    %1281 = vmatprep.subr.mxu0 0.0
    %1282 = vmatpush1.msra.mxu0 0.0
    %1283 = vmatprep.subr.mxu0 0.0
    %1284 = vmatpush1.msra.mxu0 0.0
    %1285 = vmatprep.subr.mxu0 %v1188
    %1286 = vmatpush1.msra.mxu0 %v1187
    %1287 = vmatprep.subr.mxu0 %v1172
    %1288 = vmatpush1.msra.mxu0 %v1171
    %1289 = vmatprep.subr.mxu0 %v1156
    %1290 = vmatpush1.msra.mxu0 %v1155
    %1291 = vmatprep.subr.mxu0 %v1140
    %1292 = vmatpush1.msra.mxu0 %v1139
    %1293 = vmatprep.subr.mxu0 %v1060
    %1294 = vmatpush1.msra.mxu0 %v1059
    %1295 = vmatprep.subr.mxu0 %v1124
    %1296 = vmatpush1.msra.mxu0 %v1123
    %1297 = vmatprep.subr.mxu0 %v1108
    %1298 = vmatpush1.msra.mxu0 %v1107
    %1299 = vmatprep.subr.mxu0 %v1092
    %1300 = vmatpush1.msra.mxu0 %v1091
    %1301 = vmatprep.subr.mxu0 %v1076
    %1302 = vmatpush1.msra.mxu0 %v1075
    %1303 = vmatprep.subr.mxu0 0.0
    %1304 = vmatpush2.msra.mxu0 0.0
    %1305 = vmatprep.subr.mxu0 0.0
    %1306 = vmatpush2.msra.mxu0 0.0
    %1307 = vmatprep.subr.mxu0 0.0
    %1308 = vmatpush2.msra.mxu0 0.0
    %1309 = vmatprep.subr.mxu0 0.0
    %1310 = vmatpush2.msra.mxu0 0.0
    %1311 = vmatprep.subr.mxu0 0.0
    %1312 = vmatpush2.msra.mxu0 0.0
    %1313 = vmatprep.subr.mxu0 0.0
    %1314 = vmatpush2.msra.mxu0 0.0
    %1315 = vmatprep.subr.mxu0 0.0
    %1316 = vmatpush2.msra.mxu0 0.0
    %1317 = vmatprep.subr.mxu0 0.0
    %1318 = vmatpush2.msra.mxu0 0.0
    %1319 = vmatprep.subr.mxu0 0.0
    %1320 = vmatpush2.msra.mxu0 0.0
    %1321 = vmatprep.subr.mxu0 0.0
    %1322 = vmatpush2.msra.mxu0 0.0
    %1323 = vmatprep.subr.mxu0 0.0
    %1324 = vmatpush2.msra.mxu0 0.0
    %1325 = vmatprep.subr.mxu0 0.0
    %1326 = vmatpush2.msra.mxu0 0.0
    %1327 = vmatprep.subr.mxu0 0.0
    %1328 = vmatpush2.msra.mxu0 0.0
    %1329 = vmatprep.subr.mxu0 0.0
    %1330 = vmatpush2.msra.mxu0 0.0
    %1331 = vmatprep.subr.mxu0 0.0
    %1332 = vmatpush2.msra.mxu0 0.0
    %1333 = vmatprep.subr.mxu0 0.0
    %1334 = vmatpush2.msra.mxu0 0.0
    %1335 = vmatprep.mubr.f32.mxu0 0.0
    %1336 = vmatmul.mubr.f32.gmra.mxu0 %v1198
    %v1337 = vpop.f32.mrf.mxu0
    %v1338 = vadd.f32 %v1194, %v1337
    %v1339 = vpop.f32.mrf.mxu0
    %v1340 = vadd.f32 %v1194, %v1339
    %1341 = vdwg.mxu0
    %s1342 = sld [smem:[#allocation9 + $0x1]]
    %vm1343 = vcmp.ge.f32.partialorder %v1267, 0.0
    %vm1344 = vcmp.ge.f32.partialorder %v1269, 0.0
    %vm1345 = vcmp.ge.f32.partialorder %v1338, 0.0
    %vm1346 = vcmp.ge.f32.partialorder %v1340, 0.0
    %v1347 = vstv %s1342
    %v1348 = vmul.f32 %v1347, %v1267
    %v1349 = vmul.f32 %v1347, %v1269
    %v1350 = vmul.f32 %v1347, %v1338
    %v1351 = vmul.f32 %v1347, %v1340
    %v1352 = vsel %vm1343, %v1267, %v1348
    %v1353 = vsel %vm1344, %v1269, %v1349
    %v1354 = vsel %vm1345, %v1338, %v1350
    %v1355 = vsel %vm1346, %v1340, %v1351
    %v1356 = vld [vmem:[%s6] sm:$0x3]
    %1358 = vset.pattern.permute.xlu0 0
    %1359 = vperm.xlu0 %1358, %v1356
    %v1360 = vpop.permute.xlu0 %1359
    %v1362 = vmul.f32 %v1352, %v1360
    %v1363 = vmul.f32 %v1353, %v1360
    %v1364 = vmul.f32 %v1354, %v1360
    %v1365 = vmul.f32 %v1355, %v1360
    %vm1366 = vcmask 1041408
    %v1367 = vsel %vm1366, %v1362, 0.0
    %v1368 = vrot.slane %v1367, 4
    %v1369 = vadd.f32 %v1367, %v1368
    %v1370 = vrot.slane %v1369, 2
    %v1371 = vadd.f32 %v1369, %v1370
    %v1372 = vrot.slane %v1371, 1
    %v1373 = vadd.f32 %v1371, %v1372
    %v1374 = vsel %vm1366, %v1363, 0.0
    %v1375 = vrot.slane %v1374, 4
    %v1376 = vadd.f32 %v1374, %v1375
    %v1377 = vrot.slane %v1376, 2
    %v1378 = vadd.f32 %v1376, %v1377
    %v1379 = vrot.slane %v1378, 1
    %v1380 = vadd.f32 %v1378, %v1379
    %v1381 = vsel %vm1366, %v1364, 0.0
    %v1382 = vrot.slane %v1381, 4
    %v1383 = vadd.f32 %v1381, %v1382
    %v1384 = vrot.slane %v1383, 2
    %v1385 = vadd.f32 %v1383, %v1384
    %v1386 = vrot.slane %v1385, 1
    %v1387 = vadd.f32 %v1385, %v1386
    %v1388 = vsel %vm1366, %v1365, 0.0
    %v1389 = vrot.slane %v1388, 4
    %v1390 = vadd.f32 %v1388, %v1389
    %v1391 = vrot.slane %v1390, 2
    %v1392 = vadd.f32 %v1390, %v1391
    %v1393 = vrot.slane %v1392, 1
    %v1394 = vadd.f32 %v1392, %v1393
    %s1395 = sld [smem:[#allocation9 + $0x2]]
    %v1396 = vstv %s1395
    %v1397 = vadd.f32 %v1373, %v1396
    %v1398 = vadd.f32 %v1380, %v1396
    %v1399 = vadd.f32 %v1387, %v1396
    %v1400 = vadd.f32 %v1394, %v1396
    %v1401 = vxor.u32 %v1397, 2147483648
    %v1402 = vxor.u32 %v1398, 2147483648
    %v1403 = vxor.u32 %v1399, 2147483648
    %v1404 = vxor.u32 %v1400, 2147483648
    %v1405 = vmul.f32 %v1401, 1.442695
    %v1406 = vpow.pop %v1405
    %v1407 = vmul.f32 %v1402, 1.442695
    %v1408 = vpow.pop %v1407
    %v1409 = vmul.f32 %v1403, 1.442695
    %v1410 = vpow.pop %v1409
    %v1411 = vmul.f32 %v1404, 1.442695
    %v1412 = vpow.pop %v1411
    %v1413 = vadd.f32 %v1406, 1.0
    %v1414 = vadd.f32 %v1408, 1.0
    %v1415 = vadd.f32 %v1410, 1.0
    %v1416 = vadd.f32 %v1412, 1.0
    %v1417 = vrcp.pop %v1413
    %v1418 = vmul.f32 1.0, %v1417
    %v1419 = vrcp.pop %v1414
    %v1420 = vmul.f32 1.0, %v1419
    %v1421 = vrcp.pop %v1415
    %v1422 = vmul.f32 1.0, %v1421
    %v1423 = vrcp.pop %v1416
    %v1424 = vmul.f32 1.0, %v1423
    %v1429 = vcombine.low %v1418, %v1420
    %v1430 = vcombine.low %v1422, %v1424
    %v1432 = vunpack.c.l.s4 1966171168
    %v1433 = vunpack.c.0.s8 %v1432
    %v1434 = vlaneseq
    %v1435 = vshrl.u32 %v1434, 7
    %v1436 = vsub.s32 %v1433, %v1435
    %v1437 = vrot.slane %v1429, %v1436
    %v1439 = vunpack.c.l.s4 1966171168
    %v1440 = vunpack.c.0.s8 %v1439
    %v1441 = vlaneseq
    %v1442 = vshrl.u32 %v1441, 7
    %v1443 = vsub.s32 %v1440, %v1442
    %v1444 = vrot.slane %v1430, %v1443
    %v1445 = vcombine.low %v1437, %v1444
    %v1447 = vunpack.c.l.s4 1966171168
    %v1448 = vunpack.c.0.s8 %v1447
    %v1449 = vlaneseq
    %v1450 = vshrl.u32 %v1449, 7
    %v1451 = vsub.s32 %v1448, %v1450
    %v1452 = vrot.slane %v1445, %v1451
    %v1454 = vlaneseq
    %vm1455 = vcmp.ge.s32.totalorder %v1454, 0
    %vm1456 = vcmp.lt.s32.totalorder %v1454, 512
    %vm1457 = vmand %vm1455, %vm1456
    %1458 = vst.msk [vmem:[#allocation10] sm:$0xf] %vm1457, %v1452
    // Predicated region
    $region50: #{tpu_custom_call.1} parent=1 // pred_check
      _
    $region51: #{tpu_custom_call.1} parent=1 // pred_check_branch
      %1460 = sbr.rel (0) target = $region53
    $region52: #{tpu_custom_call.1} parent=1 // pred_region
      %s1462 = ssub.s32 64, 64
      %1463 = vsyncadd [#allocation4], %s1462
      %s1465 = sshll.u32 [#allocation10], 4
      %s1466 = int_to_ptr.vmem [resolvable:$true] %s1465
      %1468 = dma.vmem_to_hbm [thread:$0]  %s1466, 64, %s8, [#allocation4]
    $region53: #{tpu_custom_call.1} parent=1 // pred_fallthru
      _
    // Predicated region
    $region54: #{tpu_custom_call.1} parent=1 // pred_check
      _
    $region55: #{tpu_custom_call.1} parent=1 // pred_check_branch
      %1470 = sbr.rel (0) target = $region57
    $region56: #{tpu_custom_call.1} parent=1 // pred_region
      %1471 = dma.done [#allocation4], 64
    $region57: #{tpu_custom_call.1} parent=1 // pred_fallthru
      _
    %1472 = vsyncpa [#allocation3], 1
    %1473 = vsyncpa [#allocation7], 1
    %1474 = vsyncpa [#allocation4], 1
    %1475 = vsyncpa [#allocation5], 1

</llo_original>
